<compile_context>
chip_gen: v6e
topology: v6e:2x2x1
jax: 0.10.0
libtpu: 0.0.40
codegen_flags: <defaults>
</compile_context>

<pallas_src>
import jax
import jax.numpy as jnp
from jax import lax
from jax.experimental import pallas as pl
from jax.experimental.pallas import tpu as pltpu


def _make_contrast_kernel(C, W, rows, base):
    """rows = N*C fused sublane rows; base = local lane offset of the output window."""

    def kernel(x_ref, xb_ref, w1_ref, b1_ref, w2_ref, b2_ref, o_ref):
        # x_ref : (rows, WIN)     fused input, row r = n*C + c, flat (h, w) lanes
        # xb_ref: (C*rows, WIN)   row ci*rows + r  holds input row n*C + ci (dense branch)
        # w1_ref: (rows, 9)       depthwise weights, col = kh*3 + kw
        # b1_ref: (rows, 1)
        # w2_ref: (rows, 9*C)     dense weights, col = (kh*3+kw)*C + ci
        # b2_ref: (rows, 1)
        # o_ref : (rows, TL)      one 128-lane slice of the flattened (H*W) output
        TL = o_ref.shape[-1]

        w1 = w1_ref[...]
        w2 = w2_ref[...]

        # Column index of each output lane. Identical for every grid step
        # because TL % W == 0 (asserted in the wrapper).
        col = lax.broadcasted_iota(jnp.int32, (1, TL), 1) % W

        def masked(part, dw):
            # Zero lanes whose tap column falls outside [0, W) (horizontal
            # zero-padding of the convs); applied once per distinct dw.
            if dw == 0:
                return part
            ok = (col + dw >= 0) & (col + dw < W)
            return jnp.where(ok, part, 0.0)

        # ---- branch 1: depthwise 3x3 conv, dilation 1, padding 1 ----------
        acc1 = jnp.zeros((rows, TL), jnp.float32)
        for kw in range(3):
            dw = kw - 1
            part = jnp.zeros((rows, TL), jnp.float32)
            for kh in range(3):
                k = kh * 3 + kw
                off = base + (kh - 1) * W + dw          # static offset
                s = x_ref[:, pl.ds(off, TL)]            # sliced load from VMEM
                part = part + s * w1[:, k:k + 1]
            acc1 = acc1 + masked(part, dw)
        y1 = acc1 + b1_ref[...]

        # ---- branch 2: dense 3x3 conv, dilation 5, padding 5 --------------
        acc2 = jnp.zeros((rows, TL), jnp.float32)
        for kw in range(3):
            dw = 5 * (kw - 1)
            part = jnp.zeros((rows, TL), jnp.float32)
            for kh in range(3):
                k = kh * 3 + kw
                off = base + 5 * (kh - 1) * W + dw      # static offset
                for ci in range(C):
                    # input channel ci is already replicated onto every fused
                    # output row in xb -> no in-kernel cross-sublane broadcast
                    s = xb_ref[pl.ds(ci * rows, rows), pl.ds(off, TL)]
                    c0 = k * C + ci
                    part = part + s * w2[:, c0:c0 + 1]
            acc2 = acc2 + masked(part, dw)
        y2 = acc2 + b2_ref[...]

        lrelu = lambda v: jnp.where(v >= 0, v, 0.2 * v)
        df = jnp.abs(lrelu(y1) - lrelu(y2))
        # sigmoid(x) == 0.5*(1 + tanh(x/2)): single EUP transcendental, no divide
        o_ref[...] = 0.5 * (1.0 + jnp.tanh(0.5 * df))

    return kernel


def contrast_forward(x_nchw, w1_oihw, b1, w2_oihw, b2):
    """x_nchw: (N, C, H, W); weights in PyTorch layout.
       w1_oihw: (C, 1, 3, 3) depthwise (groups = C = nIn = nOut)
       w2_oihw: (C, C, 3, 3) dense dilated conv
    Returns (N, C, H, W) like the PyTorch module."""
    N, C, H, W = x_nchw.shape
    lout = H * W
    TL = 128
    assert TL % W == 0 and lout % TL == 0, "layout assumes W | 128 and 128 | H*W"
    n_steps = lout // TL
    rows = N * C

    x = x_nchw.astype(jnp.float32)

    # Vertical zero halo covering the dil=5 taps; rounded up so the output
    # window starts on a 128-lane boundary (=> per-step windows start aligned).
    margin = 5 * W + 5                              # max |dh*W + dw|
    halo = -(-margin // W)
    if (halo * W) % TL:
        halo = (-(-(halo * W) // TL)) * TL // W
    out_base = halo * W                             # 128 for W=16
    lpad = (H + 2 * halo) * W

    base = out_base                                 # local output offset in each window
    WIN = (base + TL + margin + TL - 1) // TL * TL  # per-step window width (lane-aligned)

    xpad = jnp.pad(x, ((0, 0), (0, 0), (halo, halo), (0, 0)))
    xflat = xpad.reshape(rows, lpad)                # row = n*C + c, flat (h, w) lanes

    # Dense-branch replicated input: row ci*(N*C) + (n*C + cout) = xflat[n*C + ci]
    xg = xflat.reshape(N, C, lpad)
    xbfull = jnp.broadcast_to(
        jnp.transpose(xg, (1, 0, 2))[:, :, None, :], (C, N, C, lpad)
    ).reshape(C * rows, lpad)

    # Pre-sliced per-step windows (static, 128-aligned starts) so all in-kernel
    # tap reads use static offsets.
    xin = jnp.stack([xflat[:, i * TL:i * TL + WIN] for i in range(n_steps)], 0)
    xbin = jnp.stack([xbfull[:, i * TL:i * TL + WIN] for i in range(n_steps)], 0)

    # Weights tiled over batch so the fused (N*C) sublane rows index them directly.
    w1t = jnp.tile(w1_oihw.reshape(C, 9).astype(jnp.float32), (N, 1))              # (rows, 9)
    b1t = jnp.tile(b1.reshape(C, 1).astype(jnp.float32), (N, 1))                   # (rows, 1)
    w2t = jnp.tile(
        jnp.transpose(w2_oihw, (0, 2, 3, 1)).reshape(C, 9 * C).astype(jnp.float32),
        (N, 1))                                                                     # (rows, 9C)
    b2t = jnp.tile(b2.reshape(C, 1).astype(jnp.float32), (N, 1))                   # (rows, 1)

    kernel = _make_contrast_kernel(C, W, rows, base)

    out_flat = pl.pallas_call(
        kernel,
        out_shape=jax.ShapeDtypeStruct((rows, lout), jnp.float32),
        grid=(n_steps,),
        in_specs=[
            pl.BlockSpec((None, rows, WIN), lambda i: (i, 0, 0)),
            pl.BlockSpec((None, C * rows, WIN), lambda i: (i, 0, 0)),
            pl.BlockSpec((rows, 9), lambda i: (0, 0)),
            pl.BlockSpec((rows, 1), lambda i: (0, 0)),
            pl.BlockSpec((rows, 9 * C), lambda i: (0, 0)),
            pl.BlockSpec((rows, 1), lambda i: (0, 0)),
        ],
        out_specs=pl.BlockSpec((rows, TL), lambda i: (0, i)),
        compiler_params=pltpu.CompilerParams(
            dimension_semantics=("parallel",),
        ),
    )(xin, xbin, w1t, b1t, w2t, b2t)

    # Row r = n*C + c, lane l = h*W + w  ->  plain reshape restores NCHW.
    return out_flat.reshape(N, C, H, W)


def _reference(x_nchw, w1_oihw, b1, w2_oihw, b2):
    """Pure-JAX reference mirroring the PyTorch forward."""
    N, C, H, W = x_nchw.shape
    x = jnp.transpose(x_nchw, (0, 2, 3, 1)).astype(jnp.float32)
    k1 = jnp.transpose(w1_oihw, (2, 3, 1, 0))                     # (3,3,1,C) HWIO
    y1 = jax.lax.conv_general_dilated(
        x, k1, (1, 1), ((1, 1), (1, 1)),
        dimension_numbers=('NHWC', 'HWIO', 'NHWC'),
        feature_group_count=C) + b1.reshape(1, 1, 1, C)
    k2 = jnp.transpose(w2_oihw, (2, 3, 1, 0))                     # (3,3,C,C) HWIO
    y2 = jax.lax.conv_general_dilated(
        x, k2, (1, 1), ((5, 5), (5, 5)), rhs_dilation=(5, 5),
        dimension_numbers=('NHWC', 'HWIO', 'NHWC')) + b2.reshape(1, 1, 1, C)
    lrelu = lambda v: jnp.where(v >= 0, v, 0.2 * v)
    df = jnp.abs(lrelu(y1) - lrelu(y2))
    return jnp.transpose(jax.nn.sigmoid(df), (0, 3, 1, 2))


if __name__ == "__main__":
    # Small shapes consistent with the module: nIn = nOut = 4, groups = nOut
    N, C, H, W = 2, 4, 16, 16

    key = jax.random.PRNGKey(0)
    kx, kw1, kb1, kw2, kb2 = jax.random.split(key, 5)

    x = jax.random.normal(kx, (N, C, H, W), dtype=jnp.float32)
    w1 = jax.random.normal(kw1, (C, 1, 3, 3), dtype=jnp.float32) * 0.2   # depthwise
    b1 = jax.random.normal(kb1, (C,), dtype=jnp.float32) * 0.1
    w2 = jax.random.normal(kw2, (C, C, 3, 3), dtype=jnp.float32) * 0.2   # dilated dense
    b2 = jax.random.normal(kb2, (C,), dtype=jnp.float32) * 0.1

    out = contrast_forward(x, w1, b1, w2, b2)
    out = jax.block_until_ready(out)

    ref = jax.block_until_ready(_reference(x, w1, b1, w2, b2))
    assert out.shape == (N, C, H, W)
    assert jnp.allclose(out, ref, atol=1e-5, rtol=1e-5), "mismatch vs reference"

    print("KERNEL_OK")
</pallas_src>

<mosaic_0001>
module attributes {stable_mosaic.version = 11 : i64} {
  func.func @kernel(%arg0: i32, %arg1: memref<1x8x384xf32, #tpu.memory_space<vmem>>, %arg2: memref<1x32x384xf32, #tpu.memory_space<vmem>>, %arg3: memref<8x9xf32, #tpu.memory_space<vmem>>, %arg4: memref<8x1xf32, #tpu.memory_space<vmem>>, %arg5: memref<8x36xf32, #tpu.memory_space<vmem>>, %arg6: memref<8x1xf32, #tpu.memory_space<vmem>>, %arg7: memref<8x128xf32, #tpu.memory_space<vmem>>) attributes {dimension_semantics = [#tpu.dimension_semantics<parallel>], iteration_bounds = array<i64: 2>, scalar_prefetch = 0 : i64, scratch_operands = 0 : i64, tpu.core_type = #tpu.core_type<tc>, window_params = [{transform_indices = @transform_0, window_bounds = array<i64: 1, 8, 384>}, {transform_indices = @transform_1, window_bounds = array<i64: 1, 32, 384>}, {pipeline_mode = #tpu.pipeline_mode<synchronous>, transform_indices = @transform_2, window_bounds = array<i64: 8, 9>}, {pipeline_mode = #tpu.pipeline_mode<synchronous>, transform_indices = @transform_3, window_bounds = array<i64: 8, 1>}, {pipeline_mode = #tpu.pipeline_mode<synchronous>, transform_indices = @transform_4, window_bounds = array<i64: 8, 36>}, {pipeline_mode = #tpu.pipeline_mode<synchronous>, transform_indices = @transform_5, window_bounds = array<i64: 8, 1>}, {transform_indices = @transform_6, window_bounds = array<i64: 8, 128>}]} {
    %c0 = arith.constant 0 : index
    %c0_0 = arith.constant 0 : index
    %0 = vector.load %arg3[%c0, %c0_0] : memref<8x9xf32, #tpu.memory_space<vmem>>, vector<8x9xf32>
    %c0_1 = arith.constant 0 : index
    %c0_2 = arith.constant 0 : index
    %1 = vector.load %arg5[%c0_1, %c0_2] : memref<8x36xf32, #tpu.memory_space<vmem>>, vector<8x36xf32>
    %2 = tpu.iota {dimensions = array<i32: 1>} : vector<1x128xi32>
    %c16_i32 = arith.constant 16 : i32
    %c0_i32 = arith.constant 0 : i32
    %3 = arith.cmpi eq, %c16_i32, %c0_i32 : i32
    %c1_i32 = arith.constant 1 : i32
    %4 = arith.select %3, %c1_i32, %c16_i32 : i32
    %5 = vector.broadcast %4 : i32 to vector<1x128xi32>
    %6 = arith.remsi %2, %5 : vector<1x128xi32>
    %c0_i32_3 = arith.constant 0 : i32
    %7 = vector.broadcast %c0_i32_3 : i32 to vector<1x128xi32>
    %8 = arith.cmpi ne, %6, %7 : vector<1x128xi32>
    %c0_i32_4 = arith.constant 0 : i32
    %9 = vector.broadcast %c0_i32_4 : i32 to vector<1x128xi32>
    %10 = arith.cmpi slt, %6, %9 : vector<1x128xi32>
    %c0_i32_5 = arith.constant 0 : i32
    %11 = arith.cmpi slt, %4, %c0_i32_5 : i32
    %12 = vector.broadcast %11 : i1 to vector<1x128xi1>
    %13 = vector.broadcast %12 : vector<1x128xi1> to vector<1x128xi1>
    %14 = arith.xori %10, %13 : vector<1x128xi1>
    %15 = arith.andi %14, %8 : vector<1x128xi1>
    %16 = vector.broadcast %4 : i32 to vector<1x128xi32>
    %17 = arith.addi %6, %16 : vector<1x128xi32>
    %18 = arith.select %15, %17, %6 : vector<1x128xi1>, vector<1x128xi32>
    %cst = arith.constant 0.000000e+00 : f32
    %19 = vector.broadcast %cst : f32 to vector<8x128xf32>
    %cst_6 = arith.constant 0.000000e+00 : f32
    %20 = vector.broadcast %cst_6 : f32 to vector<8x128xf32>
    %c0_7 = arith.constant 0 : index
    %c0_8 = arith.constant 0 : index
    %c111 = arith.constant 111 : index
    %21 = vector.load %arg1[%c0_7, %c0_8, %c111] : memref<1x8x384xf32, #tpu.memory_space<vmem>>, vector<1x8x128xf32>
    %22 = vector.shape_cast %21 : vector<1x8x128xf32> to vector<8x128xf32>
    %23 = vector.extract_strided_slice %0 {offsets = [0, 0], sizes = [8, 1], strides = [1, 1]} : vector<8x9xf32> to vector<8x1xf32>
    %24 = vector.broadcast %23 : vector<8x1xf32> to vector<8x128xf32>
    %25 = arith.mulf %22, %24 : vector<8x128xf32>
    %26 = arith.addf %20, %25 : vector<8x128xf32>
    %c0_9 = arith.constant 0 : index
    %c0_10 = arith.constant 0 : index
    %c127 = arith.constant 127 : index
    %27 = vector.load %arg1[%c0_9, %c0_10, %c127] : memref<1x8x384xf32, #tpu.memory_space<vmem>>, vector<1x8x128xf32>
    %28 = vector.shape_cast %27 : vector<1x8x128xf32> to vector<8x128xf32>
    %29 = vector.extract_strided_slice %0 {offsets = [0, 3], sizes = [8, 1], strides = [1, 1]} : vector<8x9xf32> to vector<8x1xf32>
    %30 = vector.broadcast %29 : vector<8x1xf32> to vector<8x128xf32>
    %31 = arith.mulf %28, %30 : vector<8x128xf32>
    %32 = arith.addf %26, %31 : vector<8x128xf32>
    %c0_11 = arith.constant 0 : index
    %c0_12 = arith.constant 0 : index
    %c143 = arith.constant 143 : index
    %33 = vector.load %arg1[%c0_11, %c0_12, %c143] : memref<1x8x384xf32, #tpu.memory_space<vmem>>, vector<1x8x128xf32>
    %34 = vector.shape_cast %33 : vector<1x8x128xf32> to vector<8x128xf32>
    %35 = vector.extract_strided_slice %0 {offsets = [0, 6], sizes = [8, 1], strides = [1, 1]} : vector<8x9xf32> to vector<8x1xf32>
    %36 = vector.broadcast %35 : vector<8x1xf32> to vector<8x128xf32>
    %37 = arith.mulf %34, %36 : vector<8x128xf32>
    %38 = arith.addf %32, %37 : vector<8x128xf32>
    %c-1_i32 = arith.constant -1 : i32
    %39 = vector.broadcast %c-1_i32 : i32 to vector<1x128xi32>
    %40 = arith.addi %18, %39 : vector<1x128xi32>
    %c0_i32_13 = arith.constant 0 : i32
    %41 = vector.broadcast %c0_i32_13 : i32 to vector<1x128xi32>
    %42 = arith.cmpi sge, %40, %41 : vector<1x128xi32>
    %c-1_i32_14 = arith.constant -1 : i32
    %43 = vector.broadcast %c-1_i32_14 : i32 to vector<1x128xi32>
    %44 = arith.addi %18, %43 : vector<1x128xi32>
    %c16_i32_15 = arith.constant 16 : i32
    %45 = vector.broadcast %c16_i32_15 : i32 to vector<1x128xi32>
    %46 = arith.cmpi slt, %44, %45 : vector<1x128xi32>
    %47 = arith.andi %42, %46 : vector<1x128xi1>
    %cst_16 = arith.constant 0.000000e+00 : f32
    %48 = vector.shape_cast %47 : vector<1x128xi1> to vector<1x128xi1>
    %49 = vector.broadcast %48 : vector<1x128xi1> to vector<8x128xi1>
    %50 = vector.broadcast %cst_16 : f32 to vector<8x128xf32>
    %51 = arith.select %49, %38, %50 : vector<8x128xi1>, vector<8x128xf32>
    %52 = arith.addf %19, %51 : vector<8x128xf32>
    %cst_17 = arith.constant 0.000000e+00 : f32
    %53 = vector.broadcast %cst_17 : f32 to vector<8x128xf32>
    %c0_18 = arith.constant 0 : index
    %c0_19 = arith.constant 0 : index
    %c112 = arith.constant 112 : index
    %54 = vector.load %arg1[%c0_18, %c0_19, %c112] : memref<1x8x384xf32, #tpu.memory_space<vmem>>, vector<1x8x128xf32>
    %55 = vector.shape_cast %54 : vector<1x8x128xf32> to vector<8x128xf32>
    %56 = vector.extract_strided_slice %0 {offsets = [0, 1], sizes = [8, 1], strides = [1, 1]} : vector<8x9xf32> to vector<8x1xf32>
    %57 = vector.broadcast %56 : vector<8x1xf32> to vector<8x128xf32>
    %58 = arith.mulf %55, %57 : vector<8x128xf32>
    %59 = arith.addf %53, %58 : vector<8x128xf32>
    %c0_20 = arith.constant 0 : index
    %c0_21 = arith.constant 0 : index
    %c128 = arith.constant 128 : index
    %60 = vector.load %arg1[%c0_20, %c0_21, %c128] : memref<1x8x384xf32, #tpu.memory_space<vmem>>, vector<1x8x128xf32>
    %61 = vector.shape_cast %60 : vector<1x8x128xf32> to vector<8x128xf32>
    %62 = vector.extract_strided_slice %0 {offsets = [0, 4], sizes = [8, 1], strides = [1, 1]} : vector<8x9xf32> to vector<8x1xf32>
    %63 = vector.broadcast %62 : vector<8x1xf32> to vector<8x128xf32>
    %64 = arith.mulf %61, %63 : vector<8x128xf32>
    %65 = arith.addf %59, %64 : vector<8x128xf32>
    %c0_22 = arith.constant 0 : index
    %c0_23 = arith.constant 0 : index
    %c144 = arith.constant 144 : index
    %66 = vector.load %arg1[%c0_22, %c0_23, %c144] : memref<1x8x384xf32, #tpu.memory_space<vmem>>, vector<1x8x128xf32>
    %67 = vector.shape_cast %66 : vector<1x8x128xf32> to vector<8x128xf32>
    %68 = vector.extract_strided_slice %0 {offsets = [0, 7], sizes = [8, 1], strides = [1, 1]} : vector<8x9xf32> to vector<8x1xf32>
    %69 = vector.broadcast %68 : vector<8x1xf32> to vector<8x128xf32>
    %70 = arith.mulf %67, %69 : vector<8x128xf32>
    %71 = arith.addf %65, %70 : vector<8x128xf32>
    %72 = arith.addf %52, %71 : vector<8x128xf32>
    %cst_24 = arith.constant 0.000000e+00 : f32
    %73 = vector.broadcast %cst_24 : f32 to vector<8x128xf32>
    %c0_25 = arith.constant 0 : index
    %c0_26 = arith.constant 0 : index
    %c113 = arith.constant 113 : index
    %74 = vector.load %arg1[%c0_25, %c0_26, %c113] : memref<1x8x384xf32, #tpu.memory_space<vmem>>, vector<1x8x128xf32>
    %75 = vector.shape_cast %74 : vector<1x8x128xf32> to vector<8x128xf32>
    %76 = vector.extract_strided_slice %0 {offsets = [0, 2], sizes = [8, 1], strides = [1, 1]} : vector<8x9xf32> to vector<8x1xf32>
    %77 = vector.broadcast %76 : vector<8x1xf32> to vector<8x128xf32>
    %78 = arith.mulf %75, %77 : vector<8x128xf32>
    %79 = arith.addf %73, %78 : vector<8x128xf32>
    %c0_27 = arith.constant 0 : index
    %c0_28 = arith.constant 0 : index
    %c129 = arith.constant 129 : index
    %80 = vector.load %arg1[%c0_27, %c0_28, %c129] : memref<1x8x384xf32, #tpu.memory_space<vmem>>, vector<1x8x128xf32>
    %81 = vector.shape_cast %80 : vector<1x8x128xf32> to vector<8x128xf32>
    %82 = vector.extract_strided_slice %0 {offsets = [0, 5], sizes = [8, 1], strides = [1, 1]} : vector<8x9xf32> to vector<8x1xf32>
    %83 = vector.broadcast %82 : vector<8x1xf32> to vector<8x128xf32>
    %84 = arith.mulf %81, %83 : vector<8x128xf32>
    %85 = arith.addf %79, %84 : vector<8x128xf32>
    %c0_29 = arith.constant 0 : index
    %c0_30 = arith.constant 0 : index
    %c145 = arith.constant 145 : index
    %86 = vector.load %arg1[%c0_29, %c0_30, %c145] : memref<1x8x384xf32, #tpu.memory_space<vmem>>, vector<1x8x128xf32>
    %87 = vector.shape_cast %86 : vector<1x8x128xf32> to vector<8x128xf32>
    %88 = vector.extract_strided_slice %0 {offsets = [0, 8], sizes = [8, 1], strides = [1, 1]} : vector<8x9xf32> to vector<8x1xf32>
    %89 = vector.broadcast %88 : vector<8x1xf32> to vector<8x128xf32>
    %90 = arith.mulf %87, %89 : vector<8x128xf32>
    %91 = arith.addf %85, %90 : vector<8x128xf32>
    %c1_i32_31 = arith.constant 1 : i32
    %92 = vector.broadcast %c1_i32_31 : i32 to vector<1x128xi32>
    %93 = arith.addi %18, %92 : vector<1x128xi32>
    %c0_i32_32 = arith.constant 0 : i32
    %94 = vector.broadcast %c0_i32_32 : i32 to vector<1x128xi32>
    %95 = arith.cmpi sge, %93, %94 : vector<1x128xi32>
    %c1_i32_33 = arith.constant 1 : i32
    %96 = vector.broadcast %c1_i32_33 : i32 to vector<1x128xi32>
    %97 = arith.addi %18, %96 : vector<1x128xi32>
    %c16_i32_34 = arith.constant 16 : i32
    %98 = vector.broadcast %c16_i32_34 : i32 to vector<1x128xi32>
    %99 = arith.cmpi slt, %97, %98 : vector<1x128xi32>
    %100 = arith.andi %95, %99 : vector<1x128xi1>
    %cst_35 = arith.constant 0.000000e+00 : f32
    %101 = vector.shape_cast %100 : vector<1x128xi1> to vector<1x128xi1>
    %102 = vector.broadcast %101 : vector<1x128xi1> to vector<8x128xi1>
    %103 = vector.broadcast %cst_35 : f32 to vector<8x128xf32>
    %104 = arith.select %102, %91, %103 : vector<8x128xi1>, vector<8x128xf32>
    %105 = arith.addf %72, %104 : vector<8x128xf32>
    %c0_36 = arith.constant 0 : index
    %c0_37 = arith.constant 0 : index
    %106 = vector.load %arg4[%c0_36, %c0_37] : memref<8x1xf32, #tpu.memory_space<vmem>>, vector<8x1xf32>
    %107 = vector.broadcast %106 : vector<8x1xf32> to vector<8x128xf32>
    %108 = arith.addf %105, %107 : vector<8x128xf32>
    %cst_38 = arith.constant 0.000000e+00 : f32
    %109 = vector.broadcast %cst_38 : f32 to vector<8x128xf32>
    %cst_39 = arith.constant 0.000000e+00 : f32
    %110 = vector.broadcast %cst_39 : f32 to vector<8x128xf32>
    %c0_40 = arith.constant 0 : index
    %c0_41 = arith.constant 0 : index
    %c43 = arith.constant 43 : index
    %111 = vector.load %arg2[%c0_40, %c0_41, %c43] : memref<1x32x384xf32, #tpu.memory_space<vmem>>, vector<1x8x128xf32>
    %112 = vector.shape_cast %111 : vector<1x8x128xf32> to vector<8x128xf32>
    %113 = vector.extract_strided_slice %1 {offsets = [0, 0], sizes = [8, 1], strides = [1, 1]} : vector<8x36xf32> to vector<8x1xf32>
    %114 = vector.broadcast %113 : vector<8x1xf32> to vector<8x128xf32>
    %115 = arith.mulf %112, %114 : vector<8x128xf32>
    %116 = arith.addf %110, %115 : vector<8x128xf32>
    %c0_42 = arith.constant 0 : index
    %c8 = arith.constant 8 : index
    %c43_43 = arith.constant 43 : index
    %117 = vector.load %arg2[%c0_42, %c8, %c43_43] : memref<1x32x384xf32, #tpu.memory_space<vmem>>, vector<1x8x128xf32>
    %118 = vector.shape_cast %117 : vector<1x8x128xf32> to vector<8x128xf32>
    %119 = vector.extract_strided_slice %1 {offsets = [0, 1], sizes = [8, 1], strides = [1, 1]} : vector<8x36xf32> to vector<8x1xf32>
    %120 = vector.broadcast %119 : vector<8x1xf32> to vector<8x128xf32>
    %121 = arith.mulf %118, %120 : vector<8x128xf32>
    %122 = arith.addf %116, %121 : vector<8x128xf32>
    %c0_44 = arith.constant 0 : index
    %c16 = arith.constant 16 : index
    %c43_45 = arith.constant 43 : index
    %123 = vector.load %arg2[%c0_44, %c16, %c43_45] : memref<1x32x384xf32, #tpu.memory_space<vmem>>, vector<1x8x128xf32>
    %124 = vector.shape_cast %123 : vector<1x8x128xf32> to vector<8x128xf32>
    %125 = vector.extract_strided_slice %1 {offsets = [0, 2], sizes = [8, 1], strides = [1, 1]} : vector<8x36xf32> to vector<8x1xf32>
    %126 = vector.broadcast %125 : vector<8x1xf32> to vector<8x128xf32>
    %127 = arith.mulf %124, %126 : vector<8x128xf32>
    %128 = arith.addf %122, %127 : vector<8x128xf32>
    %c0_46 = arith.constant 0 : index
    %c24 = arith.constant 24 : index
    %c43_47 = arith.constant 43 : index
    %129 = vector.load %arg2[%c0_46, %c24, %c43_47] : memref<1x32x384xf32, #tpu.memory_space<vmem>>, vector<1x8x128xf32>
    %130 = vector.shape_cast %129 : vector<1x8x128xf32> to vector<8x128xf32>
    %131 = vector.extract_strided_slice %1 {offsets = [0, 3], sizes = [8, 1], strides = [1, 1]} : vector<8x36xf32> to vector<8x1xf32>
    %132 = vector.broadcast %131 : vector<8x1xf32> to vector<8x128xf32>
    %133 = arith.mulf %130, %132 : vector<8x128xf32>
    %134 = arith.addf %128, %133 : vector<8x128xf32>
    %c0_48 = arith.constant 0 : index
    %c0_49 = arith.constant 0 : index
    %c123 = arith.constant 123 : index
    %135 = vector.load %arg2[%c0_48, %c0_49, %c123] : memref<1x32x384xf32, #tpu.memory_space<vmem>>, vector<1x8x128xf32>
    %136 = vector.shape_cast %135 : vector<1x8x128xf32> to vector<8x128xf32>
    %137 = vector.extract_strided_slice %1 {offsets = [0, 12], sizes = [8, 1], strides = [1, 1]} : vector<8x36xf32> to vector<8x1xf32>
    %138 = vector.broadcast %137 : vector<8x1xf32> to vector<8x128xf32>
    %139 = arith.mulf %136, %138 : vector<8x128xf32>
    %140 = arith.addf %134, %139 : vector<8x128xf32>
    %c0_50 = arith.constant 0 : index
    %c8_51 = arith.constant 8 : index
    %c123_52 = arith.constant 123 : index
    %141 = vector.load %arg2[%c0_50, %c8_51, %c123_52] : memref<1x32x384xf32, #tpu.memory_space<vmem>>, vector<1x8x128xf32>
    %142 = vector.shape_cast %141 : vector<1x8x128xf32> to vector<8x128xf32>
    %143 = vector.extract_strided_slice %1 {offsets = [0, 13], sizes = [8, 1], strides = [1, 1]} : vector<8x36xf32> to vector<8x1xf32>
    %144 = vector.broadcast %143 : vector<8x1xf32> to vector<8x128xf32>
    %145 = arith.mulf %142, %144 : vector<8x128xf32>
    %146 = arith.addf %140, %145 : vector<8x128xf32>
    %c0_53 = arith.constant 0 : index
    %c16_54 = arith.constant 16 : index
    %c123_55 = arith.constant 123 : index
    %147 = vector.load %arg2[%c0_53, %c16_54, %c123_55] : memref<1x32x384xf32, #tpu.memory_space<vmem>>, vector<1x8x128xf32>
    %148 = vector.shape_cast %147 : vector<1x8x128xf32> to vector<8x128xf32>
    %149 = vector.extract_strided_slice %1 {offsets = [0, 14], sizes = [8, 1], strides = [1, 1]} : vector<8x36xf32> to vector<8x1xf32>
    %150 = vector.broadcast %149 : vector<8x1xf32> to vector<8x128xf32>
    %151 = arith.mulf %148, %150 : vector<8x128xf32>
    %152 = arith.addf %146, %151 : vector<8x128xf32>
    %c0_56 = arith.constant 0 : index
    %c24_57 = arith.constant 24 : index
    %c123_58 = arith.constant 123 : index
    %153 = vector.load %arg2[%c0_56, %c24_57, %c123_58] : memref<1x32x384xf32, #tpu.memory_space<vmem>>, vector<1x8x128xf32>
    %154 = vector.shape_cast %153 : vector<1x8x128xf32> to vector<8x128xf32>
    %155 = vector.extract_strided_slice %1 {offsets = [0, 15], sizes = [8, 1], strides = [1, 1]} : vector<8x36xf32> to vector<8x1xf32>
    %156 = vector.broadcast %155 : vector<8x1xf32> to vector<8x128xf32>
    %157 = arith.mulf %154, %156 : vector<8x128xf32>
    %158 = arith.addf %152, %157 : vector<8x128xf32>
    %c0_59 = arith.constant 0 : index
    %c0_60 = arith.constant 0 : index
    %c203 = arith.constant 203 : index
    %159 = vector.load %arg2[%c0_59, %c0_60, %c203] : memref<1x32x384xf32, #tpu.memory_space<vmem>>, vector<1x8x128xf32>
    %160 = vector.shape_cast %159 : vector<1x8x128xf32> to vector<8x128xf32>
    %161 = vector.extract_strided_slice %1 {offsets = [0, 24], sizes = [8, 1], strides = [1, 1]} : vector<8x36xf32> to vector<8x1xf32>
    %162 = vector.broadcast %161 : vector<8x1xf32> to vector<8x128xf32>
    %163 = arith.mulf %160, %162 : vector<8x128xf32>
    %164 = arith.addf %158, %163 : vector<8x128xf32>
    %c0_61 = arith.constant 0 : index
    %c8_62 = arith.constant 8 : index
    %c203_63 = arith.constant 203 : index
    %165 = vector.load %arg2[%c0_61, %c8_62, %c203_63] : memref<1x32x384xf32, #tpu.memory_space<vmem>>, vector<1x8x128xf32>
    %166 = vector.shape_cast %165 : vector<1x8x128xf32> to vector<8x128xf32>
    %167 = vector.extract_strided_slice %1 {offsets = [0, 25], sizes = [8, 1], strides = [1, 1]} : vector<8x36xf32> to vector<8x1xf32>
    %168 = vector.broadcast %167 : vector<8x1xf32> to vector<8x128xf32>
    %169 = arith.mulf %166, %168 : vector<8x128xf32>
    %170 = arith.addf %164, %169 : vector<8x128xf32>
    %c0_64 = arith.constant 0 : index
    %c16_65 = arith.constant 16 : index
    %c203_66 = arith.constant 203 : index
    %171 = vector.load %arg2[%c0_64, %c16_65, %c203_66] : memref<1x32x384xf32, #tpu.memory_space<vmem>>, vector<1x8x128xf32>
    %172 = vector.shape_cast %171 : vector<1x8x128xf32> to vector<8x128xf32>
    %173 = vector.extract_strided_slice %1 {offsets = [0, 26], sizes = [8, 1], strides = [1, 1]} : vector<8x36xf32> to vector<8x1xf32>
    %174 = vector.broadcast %173 : vector<8x1xf32> to vector<8x128xf32>
    %175 = arith.mulf %172, %174 : vector<8x128xf32>
    %176 = arith.addf %170, %175 : vector<8x128xf32>
    %c0_67 = arith.constant 0 : index
    %c24_68 = arith.constant 24 : index
    %c203_69 = arith.constant 203 : index
    %177 = vector.load %arg2[%c0_67, %c24_68, %c203_69] : memref<1x32x384xf32, #tpu.memory_space<vmem>>, vector<1x8x128xf32>
    %178 = vector.shape_cast %177 : vector<1x8x128xf32> to vector<8x128xf32>
    %179 = vector.extract_strided_slice %1 {offsets = [0, 27], sizes = [8, 1], strides = [1, 1]} : vector<8x36xf32> to vector<8x1xf32>
    %180 = vector.broadcast %179 : vector<8x1xf32> to vector<8x128xf32>
    %181 = arith.mulf %178, %180 : vector<8x128xf32>
    %182 = arith.addf %176, %181 : vector<8x128xf32>
    %c-5_i32 = arith.constant -5 : i32
    %183 = vector.broadcast %c-5_i32 : i32 to vector<1x128xi32>
    %184 = arith.addi %18, %183 : vector<1x128xi32>
    %c0_i32_70 = arith.constant 0 : i32
    %185 = vector.broadcast %c0_i32_70 : i32 to vector<1x128xi32>
    %186 = arith.cmpi sge, %184, %185 : vector<1x128xi32>
    %c-5_i32_71 = arith.constant -5 : i32
    %187 = vector.broadcast %c-5_i32_71 : i32 to vector<1x128xi32>
    %188 = arith.addi %18, %187 : vector<1x128xi32>
    %c16_i32_72 = arith.constant 16 : i32
    %189 = vector.broadcast %c16_i32_72 : i32 to vector<1x128xi32>
    %190 = arith.cmpi slt, %188, %189 : vector<1x128xi32>
    %191 = arith.andi %186, %190 : vector<1x128xi1>
    %cst_73 = arith.constant 0.000000e+00 : f32
    %192 = vector.shape_cast %191 : vector<1x128xi1> to vector<1x128xi1>
    %193 = vector.broadcast %192 : vector<1x128xi1> to vector<8x128xi1>
    %194 = vector.broadcast %cst_73 : f32 to vector<8x128xf32>
    %195 = arith.select %193, %182, %194 : vector<8x128xi1>, vector<8x128xf32>
    %196 = arith.addf %109, %195 : vector<8x128xf32>
    %cst_74 = arith.constant 0.000000e+00 : f32
    %197 = vector.broadcast %cst_74 : f32 to vector<8x128xf32>
    %c0_75 = arith.constant 0 : index
    %c0_76 = arith.constant 0 : index
    %c48 = arith.constant 48 : index
    %198 = vector.load %arg2[%c0_75, %c0_76, %c48] : memref<1x32x384xf32, #tpu.memory_space<vmem>>, vector<1x8x128xf32>
    %199 = vector.shape_cast %198 : vector<1x8x128xf32> to vector<8x128xf32>
    %200 = vector.extract_strided_slice %1 {offsets = [0, 4], sizes = [8, 1], strides = [1, 1]} : vector<8x36xf32> to vector<8x1xf32>
    %201 = vector.broadcast %200 : vector<8x1xf32> to vector<8x128xf32>
    %202 = arith.mulf %199, %201 : vector<8x128xf32>
    %203 = arith.addf %197, %202 : vector<8x128xf32>
    %c0_77 = arith.constant 0 : index
    %c8_78 = arith.constant 8 : index
    %c48_79 = arith.constant 48 : index
    %204 = vector.load %arg2[%c0_77, %c8_78, %c48_79] : memref<1x32x384xf32, #tpu.memory_space<vmem>>, vector<1x8x128xf32>
    %205 = vector.shape_cast %204 : vector<1x8x128xf32> to vector<8x128xf32>
    %206 = vector.extract_strided_slice %1 {offsets = [0, 5], sizes = [8, 1], strides = [1, 1]} : vector<8x36xf32> to vector<8x1xf32>
    %207 = vector.broadcast %206 : vector<8x1xf32> to vector<8x128xf32>
    %208 = arith.mulf %205, %207 : vector<8x128xf32>
    %209 = arith.addf %203, %208 : vector<8x128xf32>
    %c0_80 = arith.constant 0 : index
    %c16_81 = arith.constant 16 : index
    %c48_82 = arith.constant 48 : index
    %210 = vector.load %arg2[%c0_80, %c16_81, %c48_82] : memref<1x32x384xf32, #tpu.memory_space<vmem>>, vector<1x8x128xf32>
    %211 = vector.shape_cast %210 : vector<1x8x128xf32> to vector<8x128xf32>
    %212 = vector.extract_strided_slice %1 {offsets = [0, 6], sizes = [8, 1], strides = [1, 1]} : vector<8x36xf32> to vector<8x1xf32>
    %213 = vector.broadcast %212 : vector<8x1xf32> to vector<8x128xf32>
    %214 = arith.mulf %211, %213 : vector<8x128xf32>
    %215 = arith.addf %209, %214 : vector<8x128xf32>
    %c0_83 = arith.constant 0 : index
    %c24_84 = arith.constant 24 : index
    %c48_85 = arith.constant 48 : index
    %216 = vector.load %arg2[%c0_83, %c24_84, %c48_85] : memref<1x32x384xf32, #tpu.memory_space<vmem>>, vector<1x8x128xf32>
    %217 = vector.shape_cast %216 : vector<1x8x128xf32> to vector<8x128xf32>
    %218 = vector.extract_strided_slice %1 {offsets = [0, 7], sizes = [8, 1], strides = [1, 1]} : vector<8x36xf32> to vector<8x1xf32>
    %219 = vector.broadcast %218 : vector<8x1xf32> to vector<8x128xf32>
    %220 = arith.mulf %217, %219 : vector<8x128xf32>
    %221 = arith.addf %215, %220 : vector<8x128xf32>
    %c0_86 = arith.constant 0 : index
    %c0_87 = arith.constant 0 : index
    %c128_88 = arith.constant 128 : index
    %222 = vector.load %arg2[%c0_86, %c0_87, %c128_88] : memref<1x32x384xf32, #tpu.memory_space<vmem>>, vector<1x8x128xf32>
    %223 = vector.shape_cast %222 : vector<1x8x128xf32> to vector<8x128xf32>
    %224 = vector.extract_strided_slice %1 {offsets = [0, 16], sizes = [8, 1], strides = [1, 1]} : vector<8x36xf32> to vector<8x1xf32>
    %225 = vector.broadcast %224 : vector<8x1xf32> to vector<8x128xf32>
    %226 = arith.mulf %223, %225 : vector<8x128xf32>
    %227 = arith.addf %221, %226 : vector<8x128xf32>
    %c0_89 = arith.constant 0 : index
    %c8_90 = arith.constant 8 : index
    %c128_91 = arith.constant 128 : index
    %228 = vector.load %arg2[%c0_89, %c8_90, %c128_91] : memref<1x32x384xf32, #tpu.memory_space<vmem>>, vector<1x8x128xf32>
    %229 = vector.shape_cast %228 : vector<1x8x128xf32> to vector<8x128xf32>
    %230 = vector.extract_strided_slice %1 {offsets = [0, 17], sizes = [8, 1], strides = [1, 1]} : vector<8x36xf32> to vector<8x1xf32>
    %231 = vector.broadcast %230 : vector<8x1xf32> to vector<8x128xf32>
    %232 = arith.mulf %229, %231 : vector<8x128xf32>
    %233 = arith.addf %227, %232 : vector<8x128xf32>
    %c0_92 = arith.constant 0 : index
    %c16_93 = arith.constant 16 : index
    %c128_94 = arith.constant 128 : index
    %234 = vector.load %arg2[%c0_92, %c16_93, %c128_94] : memref<1x32x384xf32, #tpu.memory_space<vmem>>, vector<1x8x128xf32>
    %235 = vector.shape_cast %234 : vector<1x8x128xf32> to vector<8x128xf32>
    %236 = vector.extract_strided_slice %1 {offsets = [0, 18], sizes = [8, 1], strides = [1, 1]} : vector<8x36xf32> to vector<8x1xf32>
    %237 = vector.broadcast %236 : vector<8x1xf32> to vector<8x128xf32>
    %238 = arith.mulf %235, %237 : vector<8x128xf32>
    %239 = arith.addf %233, %238 : vector<8x128xf32>
    %c0_95 = arith.constant 0 : index
    %c24_96 = arith.constant 24 : index
    %c128_97 = arith.constant 128 : index
    %240 = vector.load %arg2[%c0_95, %c24_96, %c128_97] : memref<1x32x384xf32, #tpu.memory_space<vmem>>, vector<1x8x128xf32>
    %241 = vector.shape_cast %240 : vector<1x8x128xf32> to vector<8x128xf32>
    %242 = vector.extract_strided_slice %1 {offsets = [0, 19], sizes = [8, 1], strides = [1, 1]} : vector<8x36xf32> to vector<8x1xf32>
    %243 = vector.broadcast %242 : vector<8x1xf32> to vector<8x128xf32>
    %244 = arith.mulf %241, %243 : vector<8x128xf32>
    %245 = arith.addf %239, %244 : vector<8x128xf32>
    %c0_98 = arith.constant 0 : index
    %c0_99 = arith.constant 0 : index
    %c208 = arith.constant 208 : index
    %246 = vector.load %arg2[%c0_98, %c0_99, %c208] : memref<1x32x384xf32, #tpu.memory_space<vmem>>, vector<1x8x128xf32>
    %247 = vector.shape_cast %246 : vector<1x8x128xf32> to vector<8x128xf32>
    %248 = vector.extract_strided_slice %1 {offsets = [0, 28], sizes = [8, 1], strides = [1, 1]} : vector<8x36xf32> to vector<8x1xf32>
    %249 = vector.broadcast %248 : vector<8x1xf32> to vector<8x128xf32>
    %250 = arith.mulf %247, %249 : vector<8x128xf32>
    %251 = arith.addf %245, %250 : vector<8x128xf32>
    %c0_100 = arith.constant 0 : index
    %c8_101 = arith.constant 8 : index
    %c208_102 = arith.constant 208 : index
    %252 = vector.load %arg2[%c0_100, %c8_101, %c208_102] : memref<1x32x384xf32, #tpu.memory_space<vmem>>, vector<1x8x128xf32>
    %253 = vector.shape_cast %252 : vector<1x8x128xf32> to vector<8x128xf32>
    %254 = vector.extract_strided_slice %1 {offsets = [0, 29], sizes = [8, 1], strides = [1, 1]} : vector<8x36xf32> to vector<8x1xf32>
    %255 = vector.broadcast %254 : vector<8x1xf32> to vector<8x128xf32>
    %256 = arith.mulf %253, %255 : vector<8x128xf32>
    %257 = arith.addf %251, %256 : vector<8x128xf32>
    %c0_103 = arith.constant 0 : index
    %c16_104 = arith.constant 16 : index
    %c208_105 = arith.constant 208 : index
    %258 = vector.load %arg2[%c0_103, %c16_104, %c208_105] : memref<1x32x384xf32, #tpu.memory_space<vmem>>, vector<1x8x128xf32>
    %259 = vector.shape_cast %258 : vector<1x8x128xf32> to vector<8x128xf32>
    %260 = vector.extract_strided_slice %1 {offsets = [0, 30], sizes = [8, 1], strides = [1, 1]} : vector<8x36xf32> to vector<8x1xf32>
    %261 = vector.broadcast %260 : vector<8x1xf32> to vector<8x128xf32>
    %262 = arith.mulf %259, %261 : vector<8x128xf32>
    %263 = arith.addf %257, %262 : vector<8x128xf32>
    %c0_106 = arith.constant 0 : index
    %c24_107 = arith.constant 24 : index
    %c208_108 = arith.constant 208 : index
    %264 = vector.load %arg2[%c0_106, %c24_107, %c208_108] : memref<1x32x384xf32, #tpu.memory_space<vmem>>, vector<1x8x128xf32>
    %265 = vector.shape_cast %264 : vector<1x8x128xf32> to vector<8x128xf32>
    %266 = vector.extract_strided_slice %1 {offsets = [0, 31], sizes = [8, 1], strides = [1, 1]} : vector<8x36xf32> to vector<8x1xf32>
    %267 = vector.broadcast %266 : vector<8x1xf32> to vector<8x128xf32>
    %268 = arith.mulf %265, %267 : vector<8x128xf32>
    %269 = arith.addf %263, %268 : vector<8x128xf32>
    %270 = arith.addf %196, %269 : vector<8x128xf32>
    %cst_109 = arith.constant 0.000000e+00 : f32
    %271 = vector.broadcast %cst_109 : f32 to vector<8x128xf32>
    %c0_110 = arith.constant 0 : index
    %c0_111 = arith.constant 0 : index
    %c53 = arith.constant 53 : index
    %272 = vector.load %arg2[%c0_110, %c0_111, %c53] : memref<1x32x384xf32, #tpu.memory_space<vmem>>, vector<1x8x128xf32>
    %273 = vector.shape_cast %272 : vector<1x8x128xf32> to vector<8x128xf32>
    %274 = vector.extract_strided_slice %1 {offsets = [0, 8], sizes = [8, 1], strides = [1, 1]} : vector<8x36xf32> to vector<8x1xf32>
    %275 = vector.broadcast %274 : vector<8x1xf32> to vector<8x128xf32>
    %276 = arith.mulf %273, %275 : vector<8x128xf32>
    %277 = arith.addf %271, %276 : vector<8x128xf32>
    %c0_112 = arith.constant 0 : index
    %c8_113 = arith.constant 8 : index
    %c53_114 = arith.constant 53 : index
    %278 = vector.load %arg2[%c0_112, %c8_113, %c53_114] : memref<1x32x384xf32, #tpu.memory_space<vmem>>, vector<1x8x128xf32>
    %279 = vector.shape_cast %278 : vector<1x8x128xf32> to vector<8x128xf32>
    %280 = vector.extract_strided_slice %1 {offsets = [0, 9], sizes = [8, 1], strides = [1, 1]} : vector<8x36xf32> to vector<8x1xf32>
    %281 = vector.broadcast %280 : vector<8x1xf32> to vector<8x128xf32>
    %282 = arith.mulf %279, %281 : vector<8x128xf32>
    %283 = arith.addf %277, %282 : vector<8x128xf32>
    %c0_115 = arith.constant 0 : index
    %c16_116 = arith.constant 16 : index
    %c53_117 = arith.constant 53 : index
    %284 = vector.load %arg2[%c0_115, %c16_116, %c53_117] : memref<1x32x384xf32, #tpu.memory_space<vmem>>, vector<1x8x128xf32>
    %285 = vector.shape_cast %284 : vector<1x8x128xf32> to vector<8x128xf32>
    %286 = vector.extract_strided_slice %1 {offsets = [0, 10], sizes = [8, 1], strides = [1, 1]} : vector<8x36xf32> to vector<8x1xf32>
    %287 = vector.broadcast %286 : vector<8x1xf32> to vector<8x128xf32>
    %288 = arith.mulf %285, %287 : vector<8x128xf32>
    %289 = arith.addf %283, %288 : vector<8x128xf32>
    %c0_118 = arith.constant 0 : index
    %c24_119 = arith.constant 24 : index
    %c53_120 = arith.constant 53 : index
    %290 = vector.load %arg2[%c0_118, %c24_119, %c53_120] : memref<1x32x384xf32, #tpu.memory_space<vmem>>, vector<1x8x128xf32>
    %291 = vector.shape_cast %290 : vector<1x8x128xf32> to vector<8x128xf32>
    %292 = vector.extract_strided_slice %1 {offsets = [0, 11], sizes = [8, 1], strides = [1, 1]} : vector<8x36xf32> to vector<8x1xf32>
    %293 = vector.broadcast %292 : vector<8x1xf32> to vector<8x128xf32>
    %294 = arith.mulf %291, %293 : vector<8x128xf32>
    %295 = arith.addf %289, %294 : vector<8x128xf32>
    %c0_121 = arith.constant 0 : index
    %c0_122 = arith.constant 0 : index
    %c133 = arith.constant 133 : index
    %296 = vector.load %arg2[%c0_121, %c0_122, %c133] : memref<1x32x384xf32, #tpu.memory_space<vmem>>, vector<1x8x128xf32>
    %297 = vector.shape_cast %296 : vector<1x8x128xf32> to vector<8x128xf32>
    %298 = vector.extract_strided_slice %1 {offsets = [0, 20], sizes = [8, 1], strides = [1, 1]} : vector<8x36xf32> to vector<8x1xf32>
    %299 = vector.broadcast %298 : vector<8x1xf32> to vector<8x128xf32>
    %300 = arith.mulf %297, %299 : vector<8x128xf32>
    %301 = arith.addf %295, %300 : vector<8x128xf32>
    %c0_123 = arith.constant 0 : index
    %c8_124 = arith.constant 8 : index
    %c133_125 = arith.constant 133 : index
    %302 = vector.load %arg2[%c0_123, %c8_124, %c133_125] : memref<1x32x384xf32, #tpu.memory_space<vmem>>, vector<1x8x128xf32>
    %303 = vector.shape_cast %302 : vector<1x8x128xf32> to vector<8x128xf32>
    %304 = vector.extract_strided_slice %1 {offsets = [0, 21], sizes = [8, 1], strides = [1, 1]} : vector<8x36xf32> to vector<8x1xf32>
    %305 = vector.broadcast %304 : vector<8x1xf32> to vector<8x128xf32>
    %306 = arith.mulf %303, %305 : vector<8x128xf32>
    %307 = arith.addf %301, %306 : vector<8x128xf32>
    %c0_126 = arith.constant 0 : index
    %c16_127 = arith.constant 16 : index
    %c133_128 = arith.constant 133 : index
    %308 = vector.load %arg2[%c0_126, %c16_127, %c133_128] : memref<1x32x384xf32, #tpu.memory_space<vmem>>, vector<1x8x128xf32>
    %309 = vector.shape_cast %308 : vector<1x8x128xf32> to vector<8x128xf32>
    %310 = vector.extract_strided_slice %1 {offsets = [0, 22], sizes = [8, 1], strides = [1, 1]} : vector<8x36xf32> to vector<8x1xf32>
    %311 = vector.broadcast %310 : vector<8x1xf32> to vector<8x128xf32>
    %312 = arith.mulf %309, %311 : vector<8x128xf32>
    %313 = arith.addf %307, %312 : vector<8x128xf32>
    %c0_129 = arith.constant 0 : index
    %c24_130 = arith.constant 24 : index
    %c133_131 = arith.constant 133 : index
    %314 = vector.load %arg2[%c0_129, %c24_130, %c133_131] : memref<1x32x384xf32, #tpu.memory_space<vmem>>, vector<1x8x128xf32>
    %315 = vector.shape_cast %314 : vector<1x8x128xf32> to vector<8x128xf32>
    %316 = vector.extract_strided_slice %1 {offsets = [0, 23], sizes = [8, 1], strides = [1, 1]} : vector<8x36xf32> to vector<8x1xf32>
    %317 = vector.broadcast %316 : vector<8x1xf32> to vector<8x128xf32>
    %318 = arith.mulf %315, %317 : vector<8x128xf32>
    %319 = arith.addf %313, %318 : vector<8x128xf32>
    %c0_132 = arith.constant 0 : index
    %c0_133 = arith.constant 0 : index
    %c213 = arith.constant 213 : index
    %320 = vector.load %arg2[%c0_132, %c0_133, %c213] : memref<1x32x384xf32, #tpu.memory_space<vmem>>, vector<1x8x128xf32>
    %321 = vector.shape_cast %320 : vector<1x8x128xf32> to vector<8x128xf32>
    %322 = vector.extract_strided_slice %1 {offsets = [0, 32], sizes = [8, 1], strides = [1, 1]} : vector<8x36xf32> to vector<8x1xf32>
    %323 = vector.broadcast %322 : vector<8x1xf32> to vector<8x128xf32>
    %324 = arith.mulf %321, %323 : vector<8x128xf32>
    %325 = arith.addf %319, %324 : vector<8x128xf32>
    %c0_134 = arith.constant 0 : index
    %c8_135 = arith.constant 8 : index
    %c213_136 = arith.constant 213 : index
    %326 = vector.load %arg2[%c0_134, %c8_135, %c213_136] : memref<1x32x384xf32, #tpu.memory_space<vmem>>, vector<1x8x128xf32>
    %327 = vector.shape_cast %326 : vector<1x8x128xf32> to vector<8x128xf32>
    %328 = vector.extract_strided_slice %1 {offsets = [0, 33], sizes = [8, 1], strides = [1, 1]} : vector<8x36xf32> to vector<8x1xf32>
    %329 = vector.broadcast %328 : vector<8x1xf32> to vector<8x128xf32>
    %330 = arith.mulf %327, %329 : vector<8x128xf32>
    %331 = arith.addf %325, %330 : vector<8x128xf32>
    %c0_137 = arith.constant 0 : index
    %c16_138 = arith.constant 16 : index
    %c213_139 = arith.constant 213 : index
    %332 = vector.load %arg2[%c0_137, %c16_138, %c213_139] : memref<1x32x384xf32, #tpu.memory_space<vmem>>, vector<1x8x128xf32>
    %333 = vector.shape_cast %332 : vector<1x8x128xf32> to vector<8x128xf32>
    %334 = vector.extract_strided_slice %1 {offsets = [0, 34], sizes = [8, 1], strides = [1, 1]} : vector<8x36xf32> to vector<8x1xf32>
    %335 = vector.broadcast %334 : vector<8x1xf32> to vector<8x128xf32>
    %336 = arith.mulf %333, %335 : vector<8x128xf32>
    %337 = arith.addf %331, %336 : vector<8x128xf32>
    %c0_140 = arith.constant 0 : index
    %c24_141 = arith.constant 24 : index
    %c213_142 = arith.constant 213 : index
    %338 = vector.load %arg2[%c0_140, %c24_141, %c213_142] : memref<1x32x384xf32, #tpu.memory_space<vmem>>, vector<1x8x128xf32>
    %339 = vector.shape_cast %338 : vector<1x8x128xf32> to vector<8x128xf32>
    %340 = vector.extract_strided_slice %1 {offsets = [0, 35], sizes = [8, 1], strides = [1, 1]} : vector<8x36xf32> to vector<8x1xf32>
    %341 = vector.broadcast %340 : vector<8x1xf32> to vector<8x128xf32>
    %342 = arith.mulf %339, %341 : vector<8x128xf32>
    %343 = arith.addf %337, %342 : vector<8x128xf32>
    %c5_i32 = arith.constant 5 : i32
    %344 = vector.broadcast %c5_i32 : i32 to vector<1x128xi32>
    %345 = arith.addi %18, %344 : vector<1x128xi32>
    %c0_i32_143 = arith.constant 0 : i32
    %346 = vector.broadcast %c0_i32_143 : i32 to vector<1x128xi32>
    %347 = arith.cmpi sge, %345, %346 : vector<1x128xi32>
    %c5_i32_144 = arith.constant 5 : i32
    %348 = vector.broadcast %c5_i32_144 : i32 to vector<1x128xi32>
    %349 = arith.addi %18, %348 : vector<1x128xi32>
    %c16_i32_145 = arith.constant 16 : i32
    %350 = vector.broadcast %c16_i32_145 : i32 to vector<1x128xi32>
    %351 = arith.cmpi slt, %349, %350 : vector<1x128xi32>
    %352 = arith.andi %347, %351 : vector<1x128xi1>
    %cst_146 = arith.constant 0.000000e+00 : f32
    %353 = vector.shape_cast %352 : vector<1x128xi1> to vector<1x128xi1>
    %354 = vector.broadcast %353 : vector<1x128xi1> to vector<8x128xi1>
    %355 = vector.broadcast %cst_146 : f32 to vector<8x128xf32>
    %356 = arith.select %354, %343, %355 : vector<8x128xi1>, vector<8x128xf32>
    %357 = arith.addf %270, %356 : vector<8x128xf32>
    %c0_147 = arith.constant 0 : index
    %c0_148 = arith.constant 0 : index
    %358 = vector.load %arg6[%c0_147, %c0_148] : memref<8x1xf32, #tpu.memory_space<vmem>>, vector<8x1xf32>
    %359 = vector.broadcast %358 : vector<8x1xf32> to vector<8x128xf32>
    %360 = arith.addf %357, %359 : vector<8x128xf32>
    %cst_149 = arith.constant 0.000000e+00 : f32
    %361 = vector.broadcast %cst_149 : f32 to vector<8x128xf32>
    %362 = arith.cmpf oge, %108, %361 : vector<8x128xf32>
    %cst_150 = arith.constant 2.000000e-01 : f32
    %363 = vector.broadcast %cst_150 : f32 to vector<8x128xf32>
    %364 = arith.mulf %363, %108 : vector<8x128xf32>
    %365 = arith.select %362, %108, %364 : vector<8x128xi1>, vector<8x128xf32>
    %cst_151 = arith.constant 0.000000e+00 : f32
    %366 = vector.broadcast %cst_151 : f32 to vector<8x128xf32>
    %367 = arith.cmpf oge, %360, %366 : vector<8x128xf32>
    %cst_152 = arith.constant 2.000000e-01 : f32
    %368 = vector.broadcast %cst_152 : f32 to vector<8x128xf32>
    %369 = arith.mulf %368, %360 : vector<8x128xf32>
    %370 = arith.select %367, %360, %369 : vector<8x128xi1>, vector<8x128xf32>
    %371 = arith.subf %365, %370 : vector<8x128xf32>
    %372 = math.absf %371 : vector<8x128xf32>
    %cst_153 = arith.constant 5.000000e-01 : f32
    %373 = vector.broadcast %cst_153 : f32 to vector<8x128xf32>
    %374 = arith.mulf %373, %372 : vector<8x128xf32>
    %375 = math.tanh %374 : vector<8x128xf32>
    %cst_154 = arith.constant 1.000000e+00 : f32
    %376 = vector.broadcast %cst_154 : f32 to vector<8x128xf32>
    %377 = arith.addf %376, %375 : vector<8x128xf32>
    %cst_155 = arith.constant 5.000000e-01 : f32
    %378 = vector.broadcast %cst_155 : f32 to vector<8x128xf32>
    %379 = arith.mulf %378, %377 : vector<8x128xf32>
    %c0_156 = arith.constant 0 : index
    %c0_157 = arith.constant 0 : index
    %380 = vector.load %arg7[%c0_156, %c0_157] : memref<8x128xf32, #tpu.memory_space<vmem>>, vector<8x128xf32>
    tpu.vector_store %arg7[%c0_156, %c0_157], %379 {strides = array<i32>} : memref<8x128xf32, #tpu.memory_space<vmem>>, vector<8x128xf32>,
    return
  }
  func.func @transform_0(%arg0: i32) -> (i32, i32, i32) {
    %c0_i32 = arith.constant 0 : i32
    %c0_i32_0 = arith.constant 0 : i32
    %c0_i32_1 = arith.constant 0 : i32
    return %arg0, %c0_i32, %c0_i32_0 : i32, i32, i32
  }
  func.func @transform_1(%arg0: i32) -> (i32, i32, i32) {
    %c0_i32 = arith.constant 0 : i32
    %c0_i32_0 = arith.constant 0 : i32
    %c0_i32_1 = arith.constant 0 : i32
    return %arg0, %c0_i32, %c0_i32_0 : i32, i32, i32
  }
  func.func @transform_2(%arg0: i32) -> (i32, i32) {
    %c0_i32 = arith.constant 0 : i32
    %c0_i32_0 = arith.constant 0 : i32
    %c0_i32_1 = arith.constant 0 : i32
    return %c0_i32, %c0_i32_0 : i32, i32
  }
  func.func @transform_3(%arg0: i32) -> (i32, i32) {
    %c0_i32 = arith.constant 0 : i32
    %c0_i32_0 = arith.constant 0 : i32
    %c0_i32_1 = arith.constant 0 : i32
    return %c0_i32, %c0_i32_0 : i32, i32
  }
  func.func @transform_4(%arg0: i32) -> (i32, i32) {
    %c0_i32 = arith.constant 0 : i32
    %c0_i32_0 = arith.constant 0 : i32
    %c0_i32_1 = arith.constant 0 : i32
    return %c0_i32, %c0_i32_0 : i32, i32
  }
  func.func @transform_5(%arg0: i32) -> (i32, i32) {
    %c0_i32 = arith.constant 0 : i32
    %c0_i32_0 = arith.constant 0 : i32
    %c0_i32_1 = arith.constant 0 : i32
    return %c0_i32, %c0_i32_0 : i32, i32
  }
  func.func @transform_6(%arg0: i32) -> (i32, i32) {
    %c0_i32 = arith.constant 0 : i32
    %c0_i32_0 = arith.constant 0 : i32
    return %c0_i32, %arg0 : i32, i32
  }
}

</mosaic_0001>

<llo_original>
// kernel: tpu_custom_call.1
$region0: #{tpu_custom_call.1}
  #allocation0 [shape = 'u32[]', space=smem, size = 0x4, offset = 0x4, fixed_abs, tag = 'smem constant byte address 0x4 - core index']
  #allocation1 [shape = 'u32[144,128]{1,0:T(1,128)}', space=vmem, size = 0x12000, scoped, tag = 'internal scratch']
  %s0 = inlined_call_operand.hbm [shape: f32[2,8,384], index: 0, kind: input, shape index: {}]
  %s1 = inlined_call_operand.hbm [shape: f32[2,32,384], index: 1, kind: input, shape index: {}]
  %s2 = inlined_call_operand.vmem [shape: f32[8,9], index: 2, kind: input, shape index: {}]
  %s3 = inlined_call_operand.vmem [shape: f32[8,1], index: 3, kind: input, shape index: {}]
  %s4 = inlined_call_operand.vmem [shape: f32[8,36], index: 4, kind: input, shape index: {}]
  %s5 = inlined_call_operand.vmem [shape: f32[8,1], index: 5, kind: input, shape index: {}]
  %s6 = inlined_call_operand.hbm [shape: f32[8,256], index: 6, kind: output, shape index: {}]
  %s7 = sld [smem:[#allocation0]]
  $region65: #{tpu_custom_call.1} parent=0
    _
  %s9 = ssub.s32 1, %s7
  %s10 = scalar_select 0, %s9, %s7
  $region1: #{tpu_custom_call.1} parent=0
    #allocation2 [shape = 'u8[24576]{0}', space=vmem, size = 0x6000, scoped, tag = 'input window, operand 0']
    #allocation3 [shape = 's32[2]{0}', space=sflag, size = 0x8, scoped, tag = 'scoped memory for tpu_custom_call.1']
    #allocation4 [shape = 's32[2]{0}', space=sflag, size = 0x8, scoped, tag = 'scoped memory for tpu_custom_call.1']
    #allocation5 [shape = 'u8[98304]{0}', space=vmem, size = 0x18000, scoped, tag = 'input window, operand 1']
    #allocation6 [shape = 's32[2]{0}', space=sflag, size = 0x8, scoped, tag = 'scoped memory for tpu_custom_call.1']
    #allocation7 [shape = 'u8[8192]{0}', space=vmem, size = 0x2000, scoped, tag = 'output window, operand 0']
    %11 = vsyncpa [#allocation3], 0
    %s12 = scalar_lea.sflag [#allocation3], 1
    %13 = vsyncpa %s12, 0
    %14 = vsyncpa [#allocation6], 0
    %s15 = scalar_lea.sflag [#allocation6], 1
    %16 = vsyncpa %s15, 0
    %17 = vsyncpa [#allocation4], 0
    %s18 = scalar_lea.sflag [#allocation4], 1
    %19 = vsyncpa %s18, 0
    loop: start=0, step=1, limit=4
    $region2: #{tpu_custom_call.1} parent=1 // loop_pre_header
      _
    $region3: #{tpu_custom_call.1} parent=1 // loop_header
      %s21 = sphi 0, %s25
      %p22 = scmp.ge.s32.totalorder %s21, 4
      %s31 = sphi 0, %s33
      %s34 = sphi 0, %s31
      %s35 = sphi 0, %s34
      %s51 = sphi 0, %s35
      %s57 = sphi 0, %s59
      %s60 = sphi 0, %s57
      %s61 = sphi 0, %s60
      %s77 = sphi 0, %s61
      %s81 = sphi 0, %s81
      %s83 = sphi 0, %s81
      %s84 = sphi 0, %s83
      %s98 = sphi 0, %s84
      %s102 = sphi 0, %s102
      %s104 = sphi 0, %s102
      %s105 = sphi 0, %s104
      %s119 = sphi 0, %s105
      %s123 = sphi 0, %s123
      %s125 = sphi 0, %s123
      %s126 = sphi 0, %s125
      %s140 = sphi 0, %s126
      %s144 = sphi 0, %s144
      %s146 = sphi 0, %s144
      %s147 = sphi 0, %s146
      %s161 = sphi 0, %s147
      %s167 = sphi 0, %s169
      %s170 = sphi 0, %s167
      %s171 = sphi 0, %s170
      %s187 = sphi 0, %s171
    $region4: #{tpu_custom_call.1} parent=1 // loop_header_branch
      %24 = sbr.rel (%p22) target = $region8
    $region5: #{tpu_custom_call.1} parent=1 // loop_body
      %s26 = ssub.s32 %s21, 1
      %s27 = ssub.s32 %s21, 2
      %s28 = sadd.s32 %s21, 1
      %s29 = ssub.s32 %s21, %s28
      %p30 = scmp.eq.s32.totalorder %s29, 0
      %s32 = sadd.s32 %s31, 1
      %s33 = scalar_select %p30, %s31, %s32
      %p36 = pneg %p30
      %p37 = scmp.eq.s32.totalorder %s21, 1
      %p38 = por %p36, %p37
      %p39 = scmp.ne.s32.totalorder %s31, %s34
      %p40 = scmp.eq.s32.totalorder %s21, 0
      %p41 = por %p39, %p40
      %p42 = scmp.ne.s32.totalorder %s31, %s34
      %p43 = scmp.eq.s32.totalorder %s26, 1
      %p44 = por %p42, %p43
      %p45 = scmp.ne.s32.totalorder %s34, %s35
      %p46 = scmp.eq.s32.totalorder %s26, 0
      %p47 = por %p45, %p46
      %p48 = scmp.ne.s32.totalorder %s34, %s35
      %p49 = scmp.eq.s32.totalorder %s27, 1
      %p50 = por %p48, %p49
      %p52 = scmp.ne.s32.totalorder %s35, %s51
      %p53 = scmp.eq.s32.totalorder %s27, 0
      %p54 = por %p52, %p53
      %s55 = ssub.s32 %s21, %s28
      %p56 = scmp.eq.s32.totalorder %s55, 0
      %s58 = sadd.s32 %s57, 1
      %s59 = scalar_select %p56, %s57, %s58
      %p62 = pneg %p56
      %p63 = scmp.eq.s32.totalorder %s21, 1
      %p64 = por %p62, %p63
      %p65 = scmp.ne.s32.totalorder %s57, %s60
      %p66 = scmp.eq.s32.totalorder %s21, 0
      %p67 = por %p65, %p66
      %p68 = scmp.ne.s32.totalorder %s57, %s60
      %p69 = scmp.eq.s32.totalorder %s26, 1
      %p70 = por %p68, %p69
      %p71 = scmp.ne.s32.totalorder %s60, %s61
      %p72 = scmp.eq.s32.totalorder %s26, 0
      %p73 = por %p71, %p72
      %p74 = scmp.ne.s32.totalorder %s60, %s61
      %p75 = scmp.eq.s32.totalorder %s27, 1
      %p76 = por %p74, %p75
      %p78 = scmp.ne.s32.totalorder %s61, %s77
      %p79 = scmp.eq.s32.totalorder %s27, 0
      %p80 = por %p78, %p79
      %s82 = sadd.s32 %s81, 1
      %p85 = scmp.eq.s32.totalorder %s21, 1
      %p86 = scmp.ne.s32.totalorder %s81, %s83
      %p87 = scmp.eq.s32.totalorder %s21, 0
      %p88 = por %p86, %p87
      %p89 = scmp.ne.s32.totalorder %s81, %s83
      %p90 = scmp.eq.s32.totalorder %s26, 1
      %p91 = por %p89, %p90
      %p92 = scmp.ne.s32.totalorder %s83, %s84
      %p93 = scmp.eq.s32.totalorder %s26, 0
      %p94 = por %p92, %p93
      %p95 = scmp.ne.s32.totalorder %s83, %s84
      %p96 = scmp.eq.s32.totalorder %s27, 1
      %p97 = por %p95, %p96
      %p99 = scmp.ne.s32.totalorder %s84, %s98
      %p100 = scmp.eq.s32.totalorder %s27, 0
      %p101 = por %p99, %p100
      %s103 = sadd.s32 %s102, 1
      %p106 = scmp.eq.s32.totalorder %s21, 1
      %p107 = scmp.ne.s32.totalorder %s102, %s104
      %p108 = scmp.eq.s32.totalorder %s21, 0
      %p109 = por %p107, %p108
      %p110 = scmp.ne.s32.totalorder %s102, %s104
      %p111 = scmp.eq.s32.totalorder %s26, 1
      %p112 = por %p110, %p111
      %p113 = scmp.ne.s32.totalorder %s104, %s105
      %p114 = scmp.eq.s32.totalorder %s26, 0
      %p115 = por %p113, %p114
      %p116 = scmp.ne.s32.totalorder %s104, %s105
      %p117 = scmp.eq.s32.totalorder %s27, 1
      %p118 = por %p116, %p117
      %p120 = scmp.ne.s32.totalorder %s105, %s119
      %p121 = scmp.eq.s32.totalorder %s27, 0
      %p122 = por %p120, %p121
      %s124 = sadd.s32 %s123, 1
      %p127 = scmp.eq.s32.totalorder %s21, 1
      %p128 = scmp.ne.s32.totalorder %s123, %s125
      %p129 = scmp.eq.s32.totalorder %s21, 0
      %p130 = por %p128, %p129
      %p131 = scmp.ne.s32.totalorder %s123, %s125
      %p132 = scmp.eq.s32.totalorder %s26, 1
      %p133 = por %p131, %p132
      %p134 = scmp.ne.s32.totalorder %s125, %s126
      %p135 = scmp.eq.s32.totalorder %s26, 0
      %p136 = por %p134, %p135
      %p137 = scmp.ne.s32.totalorder %s125, %s126
      %p138 = scmp.eq.s32.totalorder %s27, 1
      %p139 = por %p137, %p138
      %p141 = scmp.ne.s32.totalorder %s126, %s140
      %p142 = scmp.eq.s32.totalorder %s27, 0
      %p143 = por %p141, %p142
      %s145 = sadd.s32 %s144, 1
      %p148 = scmp.eq.s32.totalorder %s21, 1
      %p149 = scmp.ne.s32.totalorder %s144, %s146
      %p150 = scmp.eq.s32.totalorder %s21, 0
      %p151 = por %p149, %p150
      %p152 = scmp.ne.s32.totalorder %s144, %s146
      %p153 = scmp.eq.s32.totalorder %s26, 1
      %p154 = por %p152, %p153
      %p155 = scmp.ne.s32.totalorder %s146, %s147
      %p156 = scmp.eq.s32.totalorder %s26, 0
      %p157 = por %p155, %p156
      %p158 = scmp.ne.s32.totalorder %s146, %s147
      %p159 = scmp.eq.s32.totalorder %s27, 1
      %p160 = por %p158, %p159
      %p162 = scmp.ne.s32.totalorder %s147, %s161
      %p163 = scmp.eq.s32.totalorder %s27, 0
      %p164 = por %p162, %p163
      %s165 = ssub.s32 %s21, %s28
      %p166 = scmp.eq.s32.totalorder %s165, 0
      %s168 = sadd.s32 %s167, 1
      %s169 = scalar_select %p166, %s167, %s168
      %p172 = pneg %p166
      %p173 = scmp.eq.s32.totalorder %s21, 1
      %p174 = por %p172, %p173
      %p175 = scmp.ne.s32.totalorder %s167, %s170
      %p176 = scmp.eq.s32.totalorder %s21, 0
      %p177 = por %p175, %p176
      %p178 = scmp.ne.s32.totalorder %s167, %s170
      %p179 = scmp.eq.s32.totalorder %s26, 1
      %p180 = por %p178, %p179
      %p181 = scmp.ne.s32.totalorder %s170, %s171
      %p182 = scmp.eq.s32.totalorder %s26, 0
      %p183 = por %p181, %p182
      %p184 = scmp.ne.s32.totalorder %s170, %s171
      %p185 = scmp.eq.s32.totalorder %s27, 1
      %p186 = por %p184, %p185
      %p188 = scmp.ne.s32.totalorder %s171, %s187
      %p189 = scmp.eq.s32.totalorder %s27, 0
      %p190 = por %p188, %p189
      %p191 = scmp.le.s32.totalorder 1, %s21
      %p192 = scmp.lt.s32.totalorder %s21, 3
      %p193 = pnand %p191, %p192
      %p194 = pneg %p193
      // Predicated region
      $region9: #{tpu_custom_call.1} parent=5 // pred_check
        _
      $region10: #{tpu_custom_call.1} parent=5 // pred_check_branch
        %196 = sbr.rel (%p193) target = $region12
      $region11: #{tpu_custom_call.1} parent=5 // pred_region
        %s197 = ssub.s32 %s21, 1
        // Predicated region
        $region13: #{tpu_custom_call.1} parent=11 // pred_check
          %p198 = pneg %p94
        $region14: #{tpu_custom_call.1} parent=11 // pred_check_branch
          %200 = sbr.rel (%p198) target = $region16
        $region15: #{tpu_custom_call.1} parent=11 // pred_region
          _
        $region16: #{tpu_custom_call.1} parent=11 // pred_fallthru
          _
        // Predicated region
        $region17: #{tpu_custom_call.1} parent=11 // pred_check
          %p201 = pneg %p115
        $region18: #{tpu_custom_call.1} parent=11 // pred_check_branch
          %203 = sbr.rel (%p201) target = $region20
        $region19: #{tpu_custom_call.1} parent=11 // pred_region
          _
        $region20: #{tpu_custom_call.1} parent=11 // pred_fallthru
          _
        // Predicated region
        $region21: #{tpu_custom_call.1} parent=11 // pred_check
          %p204 = pneg %p136
        $region22: #{tpu_custom_call.1} parent=11 // pred_check_branch
          %206 = sbr.rel (%p204) target = $region24
        $region23: #{tpu_custom_call.1} parent=11 // pred_region
          _
        $region24: #{tpu_custom_call.1} parent=11 // pred_fallthru
          _
        // Predicated region
        $region25: #{tpu_custom_call.1} parent=11 // pred_check
          %p207 = pneg %p157
        $region26: #{tpu_custom_call.1} parent=11 // pred_check_branch
          %209 = sbr.rel (%p207) target = $region28
        $region27: #{tpu_custom_call.1} parent=11 // pred_region
          _
        $region28: #{tpu_custom_call.1} parent=11 // pred_fallthru
          _
      $region12: #{tpu_custom_call.1} parent=5 // pred_fallthru
        _
      %p210 = scmp.lt.s32.totalorder %s21, 2
      // Predicated region
      $region29: #{tpu_custom_call.1} parent=5 // pred_check
        %p211 = pneg %p210
      $region30: #{tpu_custom_call.1} parent=5 // pred_check_branch
        %213 = sbr.rel (%p211) target = $region32
      $region31: #{tpu_custom_call.1} parent=5 // pred_region
        // Predicated region
        $region33: #{tpu_custom_call.1} parent=31 // pred_check
          %p214 = pneg %p41
        $region34: #{tpu_custom_call.1} parent=31 // pred_check_branch
          %216 = sbr.rel (%p214) target = $region36
        $region35: #{tpu_custom_call.1} parent=31 // pred_region
          %s217 = sand.u32 %s31, 1
          %s218 = scalar_lea.sflag [#allocation3], %s217
          %s219 = sand.u32 %s31, 1
          %s220 = smul.addr %s219, 24
          %s221 = scalar_lea.vmem [#allocation2], %s220
          %s223 = ssub.s32 384, 384
          %224 = vsyncadd %s218, %s223
          %s225 = smul.addr %s21, 3
          %s226 = smul.addr %s225, 128
          %s227 = scalar_lea.hbm %s0, %s226
          %s229 = sshll.u32 %s221, 4
          %s230 = int_to_ptr.vmem [resolvable:$true] %s229
          %232 = dma.hbm_to_vmem [thread:$0]  %s227, 384, %s230, %s218
        $region36: #{tpu_custom_call.1} parent=31 // pred_fallthru
          _
        // Predicated region
        $region37: #{tpu_custom_call.1} parent=31 // pred_check
          %p233 = pneg %p67
        $region38: #{tpu_custom_call.1} parent=31 // pred_check_branch
          %235 = sbr.rel (%p233) target = $region40
        $region39: #{tpu_custom_call.1} parent=31 // pred_region
          %s236 = sand.u32 %s57, 1
          %s237 = scalar_lea.sflag [#allocation6], %s236
          %s238 = sand.u32 %s57, 1
          %s239 = smul.addr %s238, 96
          %s240 = scalar_lea.vmem [#allocation5], %s239
          %s242 = ssub.s32 1536, 1536
          %243 = vsyncadd %s237, %s242
          %s244 = smul.addr %s21, 12
          %s245 = smul.addr %s244, 128
          %s246 = scalar_lea.hbm %s1, %s245
          %s247 = sshll.u32 %s240, 4
          %s248 = int_to_ptr.vmem [resolvable:$true] %s247
          %253 = dma.hbm_to_vmem [thread:$0]  %s246, 1536, %s248, %s237, 384, 384, 24
        $region40: #{tpu_custom_call.1} parent=31 // pred_fallthru
          _
      $region32: #{tpu_custom_call.1} parent=5 // pred_fallthru
        _
      %p254 = scmp.le.s32.totalorder 1, %s21
      %p255 = scmp.lt.s32.totalorder %s21, 3
      %p256 = pnand %p254, %p255
      %p257 = pneg %p256
      // Predicated region
      $region41: #{tpu_custom_call.1} parent=5 // pred_check
        _
      $region42: #{tpu_custom_call.1} parent=5 // pred_check_branch
        %259 = sbr.rel (%p256) target = $region44
      $region43: #{tpu_custom_call.1} parent=5 // pred_region
        %s260 = ssub.s32 %s21, 1
        %s261 = sand.u32 %s34, 1
        %s262 = scalar_lea.sflag [#allocation3], %s261
        %s263 = sand.u32 %s34, 1
        %s264 = smul.addr %s263, 24
        %s265 = scalar_lea.vmem [#allocation2], %s264
        // Predicated region
        $region45: #{tpu_custom_call.1} parent=43 // pred_check
          %p266 = pneg %p47
        $region46: #{tpu_custom_call.1} parent=43 // pred_check_branch
          %268 = sbr.rel (%p266) target = $region48
        $region47: #{tpu_custom_call.1} parent=43 // pred_region
          %269 = dma.done %s262, 384
        $region48: #{tpu_custom_call.1} parent=43 // pred_fallthru
          _
        %s270 = sand.u32 %s60, 1
        %s271 = scalar_lea.sflag [#allocation6], %s270
        %s272 = sand.u32 %s60, 1
        %s273 = smul.addr %s272, 96
        %s274 = scalar_lea.vmem [#allocation5], %s273
        // Predicated region
        $region49: #{tpu_custom_call.1} parent=43 // pred_check
          %p275 = pneg %p73
        $region50: #{tpu_custom_call.1} parent=43 // pred_check_branch
          %277 = sbr.rel (%p275) target = $region52
        $region51: #{tpu_custom_call.1} parent=43 // pred_region
          %278 = dma.done %s271, 1536
        $region52: #{tpu_custom_call.1} parent=43 // pred_fallthru
          _
        %s279 = sand.u32 %s34, 1
        %s280 = scalar_lea.sflag [#allocation3], %s279
        %s281 = sand.u32 %s34, 1
        %s282 = smul.addr %s281, 24
        %s283 = scalar_lea.vmem [#allocation2], %s282
        %p284 = pneg %p47
        %p285 = pneg %p44
        %s286 = sand.u32 %s60, 1
        %s287 = scalar_lea.sflag [#allocation6], %s286
        %s288 = sand.u32 %s60, 1
        %s289 = smul.addr %s288, 96
        %s290 = scalar_lea.vmem [#allocation5], %s289
        %p291 = pneg %p73
        %p292 = pneg %p70
        %p293 = pneg %p94
        %p294 = pneg %p91
        %p295 = pneg %p115
        %p296 = pneg %p112
        %p297 = pneg %p136
        %p298 = pneg %p133
        %p299 = pneg %p157
        %p300 = pneg %p154
        %p301 = pneg %p183
        %p302 = pneg %p180
        %s303 = sand.u32 %s170, 1
        %s304 = scalar_lea.sflag [#allocation4], %s303
        %s305 = sand.u32 %s170, 1
        %s306 = smul.addr %s305, 8
        %s307 = scalar_lea.vmem [#allocation7], %s306
        %v308 = vld [vmem:[%s2] sm:$0xff]
        %v309 = vld [vmem:[%s4] sm:$0xff]
        %v310 = vlaneseq
        %v311 = vand.u32 %v310, 127
        %vm312 = vcmp.lt.s32.totalorder %v311, 0
        %v313 = vsub.s32 0, %v311
        %v314 = vsel %vm312, %v313, %v311
        %v315 = vshrl.u32 %v314, 4
        %v316 = vand.u32 %v314, 15
        %v317 = vsub.s32 0, %v316
        %v318 = vsel %vm312, %v317, %v316
        %vm319 = vcmp.ne.s32.totalorder %v318, 0
        %vm320 = vcmp.lt.s32.totalorder %v318, 0
        %vm321 = vmand %vm320, %vm319
        %v322 = vadd.s32 %v318, 16
        %v323 = vsel %vm321, %v322, %v318
        %v324 = vld [vmem:[%s265] sm:$0xff]
        %v325 = vld [vmem:[%s265 + $0x8] sm:$0xff]
        %327 = vset.pattern.permute.xlu0 0
        %328 = vperm.xlu0 %327, %v308
        %v329 = vpop.permute.xlu0 %328
        %v331 = vmul.f32 %v324, %v329
        %v332 = vmul.f32 %v325, %v329
        %v333 = vadd.f32 %v331, 0.0
        %v334 = vadd.f32 %v332, 0.0
        %335 = vset.pattern.permute.xlu0 3
        %336 = vperm.xlu0 %335, %v308
        %v337 = vpop.permute.xlu0 %336
        %v339 = vmul.f32 %v324, %v337
        %v340 = vmul.f32 %v325, %v337
        %343 = vrot.lane.b32.xlu0 %v339, 112
        %v344 = vpop.permute.xlu0 %343
        %345 = vrot.lane.b32.xlu0 %v340, 112
        %v346 = vpop.permute.xlu0 %345
        %vm347 = vcmask 916480
        %v348 = vsel %vm347, %v344, %v346
        %v351 = vadd.f32 %v333, %v348
        %v352 = vadd.f32 %v334, %v346
        %v353 = vld [vmem:[%s265 + $0x8] sm:$0xff]
        %v354 = vld [vmem:[%s265 + $0x10] sm:$0xff]
        %355 = vset.pattern.permute.xlu0 6
        %356 = vperm.xlu0 %355, %v308
        %v357 = vpop.permute.xlu0 %356
        %v359 = vmul.f32 %v353, %v357
        %v360 = vmul.f32 %v354, %v357
        %363 = vrot.lane.b32.xlu0 %v359, 96
        %v364 = vpop.permute.xlu0 %363
        %365 = vrot.lane.b32.xlu0 %v360, 96
        %v366 = vpop.permute.xlu0 %365
        %vm367 = vcmask 785408
        %v368 = vsel %vm367, %v364, %v366
        %v371 = vadd.f32 %v351, %v364
        %v372 = vadd.f32 %v352, %v368
        %v373 = vadd.s32 %v323, 4294967295
        %vm374 = vcmp.ge.s32.totalorder %v373, 0
        %vm375 = vcmp.lt.s32.totalorder %v373, 16
        %vm376 = vmand %vm374, %vm375
        %v377 = vsel %vm376, 1, 0
        %vm378 = vcmp.eq.s32.totalorder %v377, 1
        %381 = vrot.lane.b32.xlu0 %v371, 17
        %v382 = vpop.permute.xlu0 %381
        %383 = vrot.lane.b32.xlu0 %v372, 17
        %v384 = vpop.permute.xlu0 %383
        %vm385 = vcmask 138240
        %v386 = vsel %vm385, %v382, %v384
        %v388 = vsel %vm378, %v386, 0.0
        %v389 = vadd.f32 %v388, 0.0
        %390 = vset.pattern.permute.xlu0 1
        %391 = vperm.xlu0 %390, %v308
        %v392 = vpop.permute.xlu0 %391
        %v394 = vmul.f32 %v324, %v392
        %v395 = vmul.f32 %v325, %v392
        %v396 = vadd.f32 %v394, 0.0
        %v397 = vadd.f32 %v395, 0.0
        %398 = vset.pattern.permute.xlu0 4
        %399 = vperm.xlu0 %398, %v308
        %v400 = vpop.permute.xlu0 %399
        %v402 = vmul.f32 %v325, %v400
        %404 = vrot.lane.b32.xlu0 %v402, 112
        %v405 = vpop.permute.xlu0 %404
        %v407 = vadd.f32 %v396, %v405
        %v408 = vadd.f32 %v397, %v405
        %409 = vset.pattern.permute.xlu0 7
        %410 = vperm.xlu0 %409, %v308
        %v411 = vpop.permute.xlu0 %410
        %v413 = vmul.f32 %v353, %v411
        %v414 = vmul.f32 %v354, %v411
        %417 = vrot.lane.b32.xlu0 %v413, 96
        %v418 = vpop.permute.xlu0 %417
        %419 = vrot.lane.b32.xlu0 %v414, 96
        %v420 = vpop.permute.xlu0 %419
        %v421 = vsel %vm367, %v418, %v420
        %v424 = vadd.f32 %v407, %v418
        %v425 = vadd.f32 %v408, %v421
        %428 = vrot.lane.b32.xlu0 %v424, 16
        %v429 = vpop.permute.xlu0 %428
        %430 = vrot.lane.b32.xlu0 %v425, 16
        %v431 = vpop.permute.xlu0 %430
        %vm432 = vcmask 130048
        %v433 = vsel %vm432, %v429, %v431
        %v435 = vadd.f32 %v389, %v433
        %436 = vset.pattern.permute.xlu0 2
        %437 = vperm.xlu0 %436, %v308
        %v438 = vpop.permute.xlu0 %437
        %v440 = vmul.f32 %v324, %v438
        %v441 = vmul.f32 %v325, %v438
        %v442 = vadd.f32 %v440, 0.0
        %v443 = vadd.f32 %v441, 0.0
        %444 = vset.pattern.permute.xlu0 5
        %445 = vperm.xlu0 %444, %v308
        %v446 = vpop.permute.xlu0 %445
        %v448 = vmul.f32 %v353, %v446
        %v449 = vmul.f32 %v354, %v446
        %452 = vrot.lane.b32.xlu0 %v448, 112
        %v453 = vpop.permute.xlu0 %452
        %454 = vrot.lane.b32.xlu0 %v449, 112
        %v455 = vpop.permute.xlu0 %454
        %v456 = vsel %vm347, %v453, %v455
        %v459 = vadd.f32 %v442, %v453
        %v460 = vadd.f32 %v443, %v456
        %461 = vset.pattern.permute.xlu0 8
        %462 = vperm.xlu0 %461, %v308
        %v463 = vpop.permute.xlu0 %462
        %v465 = vmul.f32 %v353, %v463
        %v466 = vmul.f32 %v354, %v463
        %469 = vrot.lane.b32.xlu0 %v465, 96
        %v470 = vpop.permute.xlu0 %469
        %471 = vrot.lane.b32.xlu0 %v466, 96
        %v472 = vpop.permute.xlu0 %471
        %v473 = vsel %vm367, %v470, %v472
        %v476 = vadd.f32 %v459, %v470
        %v477 = vadd.f32 %v460, %v473
        %v478 = vadd.s32 %v323, 1
        %vm479 = vcmp.ge.s32.totalorder %v478, 0
        %vm480 = vcmp.lt.s32.totalorder %v478, 16
        %vm481 = vmand %vm479, %vm480
        %v482 = vsel %vm481, 1, 0
        %vm483 = vcmp.eq.s32.totalorder %v482, 1
        %486 = vrot.lane.b32.xlu0 %v476, 15
        %v487 = vpop.permute.xlu0 %486
        %488 = vrot.lane.b32.xlu0 %v477, 15
        %v489 = vpop.permute.xlu0 %488
        %vm490 = vcmask 121856
        %v491 = vsel %vm490, %v487, %v489
        %v493 = vsel %vm483, %v491, 0.0
        %v494 = vadd.f32 %v435, %v493
        %v495 = vld [vmem:[%s3] sm:$0xff]
        %497 = vset.pattern.permute.xlu0 0
        %498 = vperm.xlu0 %497, %v495
        %v499 = vpop.permute.xlu0 %498
        %v501 = vadd.f32 %v494, %v499
        %v502 = vld [vmem:[%s274] sm:$0xff]
        %v503 = vld [vmem:[%s274 + $0x8] sm:$0xff]
        %505 = vset.pattern.permute.xlu0 0
        %506 = vperm.xlu0 %505, %v309
        %v507 = vpop.permute.xlu0 %506
        %v509 = vmul.f32 %v502, %v507
        %v510 = vmul.f32 %v503, %v507
        %v511 = vadd.f32 %v509, 0.0
        %v512 = vadd.f32 %v510, 0.0
        %v513 = vld [vmem:[%s274 + $0x18] sm:$0xff]
        %v514 = vld [vmem:[%s274 + $0x20] sm:$0xff]
        %515 = vset.pattern.permute.xlu0 1
        %516 = vperm.xlu0 %515, %v309
        %v517 = vpop.permute.xlu0 %516
        %v519 = vmul.f32 %v513, %v517
        %v520 = vmul.f32 %v514, %v517
        %v521 = vadd.f32 %v511, %v519
        %v522 = vadd.f32 %v512, %v520
        %v523 = vld [vmem:[%s274 + $0x30] sm:$0xff]
        %v524 = vld [vmem:[%s274 + $0x38] sm:$0xff]
        %525 = vset.pattern.permute.xlu0 2
        %526 = vperm.xlu0 %525, %v309
        %v527 = vpop.permute.xlu0 %526
        %v529 = vmul.f32 %v523, %v527
        %v530 = vmul.f32 %v524, %v527
        %v531 = vadd.f32 %v521, %v529
        %v532 = vadd.f32 %v522, %v530
        %v533 = vld [vmem:[%s274 + $0x48] sm:$0xff]
        %v534 = vld [vmem:[%s274 + $0x50] sm:$0xff]
        %535 = vset.pattern.permute.xlu0 3
        %536 = vperm.xlu0 %535, %v309
        %v537 = vpop.permute.xlu0 %536
        %v539 = vmul.f32 %v533, %v537
        %v540 = vmul.f32 %v534, %v537
        %v541 = vadd.f32 %v531, %v539
        %v542 = vadd.f32 %v532, %v540
        %543 = vset.pattern.permute.xlu0 12
        %544 = vperm.xlu0 %543, %v309
        %v545 = vpop.permute.xlu0 %544
        %v547 = vmul.f32 %v502, %v545
        %v548 = vmul.f32 %v503, %v545
        %551 = vrot.lane.b32.xlu0 %v547, 48
        %v552 = vpop.permute.xlu0 %551
        %553 = vrot.lane.b32.xlu0 %v548, 48
        %v554 = vpop.permute.xlu0 %553
        %vm555 = vcmask 392192
        %v556 = vsel %vm555, %v552, %v554
        %v559 = vadd.f32 %v541, %v556
        %v560 = vadd.f32 %v542, %v554
        %561 = vset.pattern.permute.xlu0 13
        %562 = vperm.xlu0 %561, %v309
        %v563 = vpop.permute.xlu0 %562
        %v565 = vmul.f32 %v513, %v563
        %v566 = vmul.f32 %v514, %v563
        %569 = vrot.lane.b32.xlu0 %v565, 48
        %v570 = vpop.permute.xlu0 %569
        %571 = vrot.lane.b32.xlu0 %v566, 48
        %v572 = vpop.permute.xlu0 %571
        %v573 = vsel %vm555, %v570, %v572
        %v576 = vadd.f32 %v559, %v573
        %v577 = vadd.f32 %v560, %v572
        %578 = vset.pattern.permute.xlu0 14
        %579 = vperm.xlu0 %578, %v309
        %v580 = vpop.permute.xlu0 %579
        %v582 = vmul.f32 %v523, %v580
        %v583 = vmul.f32 %v524, %v580
        %586 = vrot.lane.b32.xlu0 %v582, 48
        %v587 = vpop.permute.xlu0 %586
        %588 = vrot.lane.b32.xlu0 %v583, 48
        %v589 = vpop.permute.xlu0 %588
        %v590 = vsel %vm555, %v587, %v589
        %v593 = vadd.f32 %v576, %v590
        %v594 = vadd.f32 %v577, %v589
        %595 = vset.pattern.permute.xlu0 15
        %596 = vperm.xlu0 %595, %v309
        %v597 = vpop.permute.xlu0 %596
        %v599 = vmul.f32 %v533, %v597
        %v600 = vmul.f32 %v534, %v597
        %603 = vrot.lane.b32.xlu0 %v599, 48
        %v604 = vpop.permute.xlu0 %603
        %605 = vrot.lane.b32.xlu0 %v600, 48
        %v606 = vpop.permute.xlu0 %605
        %v607 = vsel %vm555, %v604, %v606
        %v610 = vadd.f32 %v593, %v607
        %v611 = vadd.f32 %v594, %v606
        %v612 = vld [vmem:[%s274 + $0x8] sm:$0xff]
        %v613 = vld [vmem:[%s274 + $0x10] sm:$0xff]
        %614 = vset.pattern.permute.xlu0 24
        %615 = vperm.xlu0 %614, %v309
        %v616 = vpop.permute.xlu0 %615
        %v618 = vmul.f32 %v612, %v616
        %v619 = vmul.f32 %v613, %v616
        %622 = vrot.lane.b32.xlu0 %v618, 96
        %v623 = vpop.permute.xlu0 %622
        %624 = vrot.lane.b32.xlu0 %v619, 96
        %v625 = vpop.permute.xlu0 %624
        %v626 = vsel %vm367, %v623, %v625
        %v629 = vadd.f32 %v610, %v626
        %v630 = vadd.f32 %v611, %v625
        %v631 = vld [vmem:[%s274 + $0x20] sm:$0xff]
        %v632 = vld [vmem:[%s274 + $0x28] sm:$0xff]
        %633 = vset.pattern.permute.xlu0 25
        %634 = vperm.xlu0 %633, %v309
        %v635 = vpop.permute.xlu0 %634
        %v637 = vmul.f32 %v631, %v635
        %v638 = vmul.f32 %v632, %v635
        %641 = vrot.lane.b32.xlu0 %v637, 96
        %v642 = vpop.permute.xlu0 %641
        %643 = vrot.lane.b32.xlu0 %v638, 96
        %v644 = vpop.permute.xlu0 %643
        %v645 = vsel %vm367, %v642, %v644
        %v648 = vadd.f32 %v629, %v645
        %v649 = vadd.f32 %v630, %v644
        %v650 = vld [vmem:[%s274 + $0x38] sm:$0xff]
        %v651 = vld [vmem:[%s274 + $0x40] sm:$0xff]
        %652 = vset.pattern.permute.xlu0 26
        %653 = vperm.xlu0 %652, %v309
        %v654 = vpop.permute.xlu0 %653
        %v656 = vmul.f32 %v650, %v654
        %v657 = vmul.f32 %v651, %v654
        %660 = vrot.lane.b32.xlu0 %v656, 96
        %v661 = vpop.permute.xlu0 %660
        %662 = vrot.lane.b32.xlu0 %v657, 96
        %v663 = vpop.permute.xlu0 %662
        %v664 = vsel %vm367, %v661, %v663
        %v667 = vadd.f32 %v648, %v664
        %v668 = vadd.f32 %v649, %v663
        %v669 = vld [vmem:[%s274 + $0x50] sm:$0xff]
        %v670 = vld [vmem:[%s274 + $0x58] sm:$0xff]
        %671 = vset.pattern.permute.xlu0 27
        %672 = vperm.xlu0 %671, %v309
        %v673 = vpop.permute.xlu0 %672
        %v675 = vmul.f32 %v669, %v673
        %v676 = vmul.f32 %v670, %v673
        %679 = vrot.lane.b32.xlu0 %v675, 96
        %v680 = vpop.permute.xlu0 %679
        %681 = vrot.lane.b32.xlu0 %v676, 96
        %v682 = vpop.permute.xlu0 %681
        %v683 = vsel %vm367, %v680, %v682
        %v686 = vadd.f32 %v667, %v683
        %v687 = vadd.f32 %v668, %v682
        %v688 = vadd.s32 %v323, 4294967291
        %vm689 = vcmp.ge.s32.totalorder %v688, 0
        %vm690 = vcmp.lt.s32.totalorder %v688, 16
        %vm691 = vmand %vm689, %vm690
        %v692 = vsel %vm691, 1, 0
        %vm693 = vcmp.eq.s32.totalorder %v692, 1
        %696 = vrot.lane.b32.xlu0 %v686, 85
        %v697 = vpop.permute.xlu0 %696
        %698 = vrot.lane.b32.xlu0 %v687, 85
        %v699 = vpop.permute.xlu0 %698
        %vm700 = vcmask 695296
        %v701 = vsel %vm700, %v697, %v699
        %v703 = vsel %vm693, %v701, 0.0
        %v704 = vadd.f32 %v703, 0.0
        %705 = vset.pattern.permute.xlu0 4
        %706 = vperm.xlu0 %705, %v309
        %v707 = vpop.permute.xlu0 %706
        %v709 = vmul.f32 %v502, %v707
        %v710 = vmul.f32 %v503, %v707
        %v711 = vadd.f32 %v709, 0.0
        %v712 = vadd.f32 %v710, 0.0
        %713 = vset.pattern.permute.xlu0 5
        %714 = vperm.xlu0 %713, %v309
        %v715 = vpop.permute.xlu0 %714
        %v717 = vmul.f32 %v513, %v715
        %v718 = vmul.f32 %v514, %v715
        %v719 = vadd.f32 %v711, %v717
        %v720 = vadd.f32 %v712, %v718
        %721 = vset.pattern.permute.xlu0 6
        %722 = vperm.xlu0 %721, %v309
        %v723 = vpop.permute.xlu0 %722
        %v725 = vmul.f32 %v523, %v723
        %v726 = vmul.f32 %v524, %v723
        %v727 = vadd.f32 %v719, %v725
        %v728 = vadd.f32 %v720, %v726
        %729 = vset.pattern.permute.xlu0 7
        %730 = vperm.xlu0 %729, %v309
        %v731 = vpop.permute.xlu0 %730
        %v733 = vmul.f32 %v533, %v731
        %v734 = vmul.f32 %v534, %v731
        %v735 = vadd.f32 %v727, %v733
        %v736 = vadd.f32 %v728, %v734
        %737 = vset.pattern.permute.xlu0 16
        %738 = vperm.xlu0 %737, %v309
        %v739 = vpop.permute.xlu0 %738
        %v741 = vmul.f32 %v503, %v739
        %743 = vrot.lane.b32.xlu0 %v741, 48
        %v744 = vpop.permute.xlu0 %743
        %v746 = vadd.f32 %v735, %v744
        %v747 = vadd.f32 %v736, %v744
        %748 = vset.pattern.permute.xlu0 17
        %749 = vperm.xlu0 %748, %v309
        %v750 = vpop.permute.xlu0 %749
        %v752 = vmul.f32 %v514, %v750
        %754 = vrot.lane.b32.xlu0 %v752, 48
        %v755 = vpop.permute.xlu0 %754
        %v757 = vadd.f32 %v746, %v755
        %v758 = vadd.f32 %v747, %v755
        %759 = vset.pattern.permute.xlu0 18
        %760 = vperm.xlu0 %759, %v309
        %v761 = vpop.permute.xlu0 %760
        %v763 = vmul.f32 %v524, %v761
        %765 = vrot.lane.b32.xlu0 %v763, 48
        %v766 = vpop.permute.xlu0 %765
        %v768 = vadd.f32 %v757, %v766
        %v769 = vadd.f32 %v758, %v766
        %770 = vset.pattern.permute.xlu0 19
        %771 = vperm.xlu0 %770, %v309
        %v772 = vpop.permute.xlu0 %771
        %v774 = vmul.f32 %v534, %v772
        %776 = vrot.lane.b32.xlu0 %v774, 48
        %v777 = vpop.permute.xlu0 %776
        %v779 = vadd.f32 %v768, %v777
        %v780 = vadd.f32 %v769, %v777
        %781 = vset.pattern.permute.xlu0 28
        %782 = vperm.xlu0 %781, %v309
        %v783 = vpop.permute.xlu0 %782
        %v785 = vmul.f32 %v612, %v783
        %v786 = vmul.f32 %v613, %v783
        %789 = vrot.lane.b32.xlu0 %v785, 96
        %v790 = vpop.permute.xlu0 %789
        %791 = vrot.lane.b32.xlu0 %v786, 96
        %v792 = vpop.permute.xlu0 %791
        %v793 = vsel %vm367, %v790, %v792
        %v796 = vadd.f32 %v779, %v793
        %v797 = vadd.f32 %v780, %v792
        %798 = vset.pattern.permute.xlu0 29
        %799 = vperm.xlu0 %798, %v309
        %v800 = vpop.permute.xlu0 %799
        %v802 = vmul.f32 %v631, %v800
        %v803 = vmul.f32 %v632, %v800
        %806 = vrot.lane.b32.xlu0 %v802, 96
        %v807 = vpop.permute.xlu0 %806
        %808 = vrot.lane.b32.xlu0 %v803, 96
        %v809 = vpop.permute.xlu0 %808
        %v810 = vsel %vm367, %v807, %v809
        %v813 = vadd.f32 %v796, %v810
        %v814 = vadd.f32 %v797, %v809
        %815 = vset.pattern.permute.xlu0 30
        %816 = vperm.xlu0 %815, %v309
        %v817 = vpop.permute.xlu0 %816
        %v819 = vmul.f32 %v650, %v817
        %v820 = vmul.f32 %v651, %v817
        %823 = vrot.lane.b32.xlu0 %v819, 96
        %v824 = vpop.permute.xlu0 %823
        %825 = vrot.lane.b32.xlu0 %v820, 96
        %v826 = vpop.permute.xlu0 %825
        %v827 = vsel %vm367, %v824, %v826
        %v830 = vadd.f32 %v813, %v827
        %v831 = vadd.f32 %v814, %v826
        %832 = vset.pattern.permute.xlu0 31
        %833 = vperm.xlu0 %832, %v309
        %v834 = vpop.permute.xlu0 %833
        %v836 = vmul.f32 %v669, %v834
        %v837 = vmul.f32 %v670, %v834
        %840 = vrot.lane.b32.xlu0 %v836, 96
        %v841 = vpop.permute.xlu0 %840
        %842 = vrot.lane.b32.xlu0 %v837, 96
        %v843 = vpop.permute.xlu0 %842
        %v844 = vsel %vm367, %v841, %v843
        %v847 = vadd.f32 %v830, %v844
        %v848 = vadd.f32 %v831, %v843
        %851 = vrot.lane.b32.xlu0 %v847, 80
        %v852 = vpop.permute.xlu0 %851
        %853 = vrot.lane.b32.xlu0 %v848, 80
        %v854 = vpop.permute.xlu0 %853
        %vm855 = vcmask 654336
        %v856 = vsel %vm855, %v852, %v854
        %v858 = vadd.f32 %v704, %v856
        %859 = vset.pattern.permute.xlu0 8
        %860 = vperm.xlu0 %859, %v309
        %v861 = vpop.permute.xlu0 %860
        %v863 = vmul.f32 %v502, %v861
        %v864 = vmul.f32 %v503, %v861
        %v865 = vadd.f32 %v863, 0.0
        %v866 = vadd.f32 %v864, 0.0
        %867 = vset.pattern.permute.xlu0 9
        %868 = vperm.xlu0 %867, %v309
        %v869 = vpop.permute.xlu0 %868
        %v871 = vmul.f32 %v513, %v869
        %v872 = vmul.f32 %v514, %v869
        %v873 = vadd.f32 %v865, %v871
        %v874 = vadd.f32 %v866, %v872
        %875 = vset.pattern.permute.xlu0 10
        %876 = vperm.xlu0 %875, %v309
        %v877 = vpop.permute.xlu0 %876
        %v879 = vmul.f32 %v523, %v877
        %v880 = vmul.f32 %v524, %v877
        %v881 = vadd.f32 %v873, %v879
        %v882 = vadd.f32 %v874, %v880
        %883 = vset.pattern.permute.xlu0 11
        %884 = vperm.xlu0 %883, %v309
        %v885 = vpop.permute.xlu0 %884
        %v887 = vmul.f32 %v533, %v885
        %v888 = vmul.f32 %v534, %v885
        %v889 = vadd.f32 %v881, %v887
        %v890 = vadd.f32 %v882, %v888
        %891 = vset.pattern.permute.xlu0 20
        %892 = vperm.xlu0 %891, %v309
        %v893 = vpop.permute.xlu0 %892
        %v895 = vmul.f32 %v612, %v893
        %v896 = vmul.f32 %v613, %v893
        %899 = vrot.lane.b32.xlu0 %v895, 48
        %v900 = vpop.permute.xlu0 %899
        %901 = vrot.lane.b32.xlu0 %v896, 48
        %v902 = vpop.permute.xlu0 %901
        %v903 = vsel %vm555, %v900, %v902
        %v906 = vadd.f32 %v889, %v900
        %v907 = vadd.f32 %v890, %v903
        %908 = vset.pattern.permute.xlu0 21
        %909 = vperm.xlu0 %908, %v309
        %v910 = vpop.permute.xlu0 %909
        %v912 = vmul.f32 %v631, %v910
        %v913 = vmul.f32 %v632, %v910
        %916 = vrot.lane.b32.xlu0 %v912, 48
        %v917 = vpop.permute.xlu0 %916
        %918 = vrot.lane.b32.xlu0 %v913, 48
        %v919 = vpop.permute.xlu0 %918
        %v920 = vsel %vm555, %v917, %v919
        %v923 = vadd.f32 %v906, %v917
        %v924 = vadd.f32 %v907, %v920
        %925 = vset.pattern.permute.xlu0 22
        %926 = vperm.xlu0 %925, %v309
        %v927 = vpop.permute.xlu0 %926
        %v929 = vmul.f32 %v650, %v927
        %v930 = vmul.f32 %v651, %v927
        %933 = vrot.lane.b32.xlu0 %v929, 48
        %v934 = vpop.permute.xlu0 %933
        %935 = vrot.lane.b32.xlu0 %v930, 48
        %v936 = vpop.permute.xlu0 %935
        %v937 = vsel %vm555, %v934, %v936
        %v940 = vadd.f32 %v923, %v934
        %v941 = vadd.f32 %v924, %v937
        %942 = vset.pattern.permute.xlu0 23
        %943 = vperm.xlu0 %942, %v309
        %v944 = vpop.permute.xlu0 %943
        %v946 = vmul.f32 %v669, %v944
        %v947 = vmul.f32 %v670, %v944
        %950 = vrot.lane.b32.xlu0 %v946, 48
        %v951 = vpop.permute.xlu0 %950
        %952 = vrot.lane.b32.xlu0 %v947, 48
        %v953 = vpop.permute.xlu0 %952
        %v954 = vsel %vm555, %v951, %v953
        %v957 = vadd.f32 %v940, %v951
        %v958 = vadd.f32 %v941, %v954
        %959 = vset.pattern.permute.xlu0 32
        %960 = vperm.xlu0 %959, %v309
        %v961 = vpop.permute.xlu0 %960
        %v963 = vmul.f32 %v612, %v961
        %v964 = vmul.f32 %v613, %v961
        %967 = vrot.lane.b32.xlu0 %v963, 96
        %v968 = vpop.permute.xlu0 %967
        %969 = vrot.lane.b32.xlu0 %v964, 96
        %v970 = vpop.permute.xlu0 %969
        %v971 = vsel %vm367, %v968, %v970
        %v974 = vadd.f32 %v957, %v971
        %v975 = vadd.f32 %v958, %v970
        %976 = vset.pattern.permute.xlu0 33
        %977 = vperm.xlu0 %976, %v309
        %v978 = vpop.permute.xlu0 %977
        %v980 = vmul.f32 %v631, %v978
        %v981 = vmul.f32 %v632, %v978
        %984 = vrot.lane.b32.xlu0 %v980, 96
        %v985 = vpop.permute.xlu0 %984
        %986 = vrot.lane.b32.xlu0 %v981, 96
        %v987 = vpop.permute.xlu0 %986
        %v988 = vsel %vm367, %v985, %v987
        %v991 = vadd.f32 %v974, %v988
        %v992 = vadd.f32 %v975, %v987
        %993 = vset.pattern.permute.xlu0 34
        %994 = vperm.xlu0 %993, %v309
        %v995 = vpop.permute.xlu0 %994
        %v997 = vmul.f32 %v650, %v995
        %v998 = vmul.f32 %v651, %v995
        %1001 = vrot.lane.b32.xlu0 %v997, 96
        %v1002 = vpop.permute.xlu0 %1001
        %1003 = vrot.lane.b32.xlu0 %v998, 96
        %v1004 = vpop.permute.xlu0 %1003
        %v1005 = vsel %vm367, %v1002, %v1004
        %v1008 = vadd.f32 %v991, %v1005
        %v1009 = vadd.f32 %v992, %v1004
        %1010 = vset.pattern.permute.xlu0 35
        %1011 = vperm.xlu0 %1010, %v309
        %v1012 = vpop.permute.xlu0 %1011
        %v1014 = vmul.f32 %v669, %v1012
        %v1015 = vmul.f32 %v670, %v1012
        %1018 = vrot.lane.b32.xlu0 %v1014, 96
        %v1019 = vpop.permute.xlu0 %1018
        %1020 = vrot.lane.b32.xlu0 %v1015, 96
        %v1021 = vpop.permute.xlu0 %1020
        %v1022 = vsel %vm367, %v1019, %v1021
        %v1025 = vadd.f32 %v1008, %v1022
        %v1026 = vadd.f32 %v1009, %v1021
        %v1027 = vadd.s32 %v323, 5
        %vm1028 = vcmp.ge.s32.totalorder %v1027, 0
        %vm1029 = vcmp.lt.s32.totalorder %v1027, 16
        %vm1030 = vmand %vm1028, %vm1029
        %v1031 = vsel %vm1030, 1, 0
        %vm1032 = vcmp.eq.s32.totalorder %v1031, 1
        %1035 = vrot.lane.b32.xlu0 %v1025, 75
        %v1036 = vpop.permute.xlu0 %1035
        %1037 = vrot.lane.b32.xlu0 %v1026, 75
        %v1038 = vpop.permute.xlu0 %1037
        %vm1039 = vcmask 613376
        %v1040 = vsel %vm1039, %v1036, %v1038
        %v1042 = vsel %vm1032, %v1040, 0.0
        %v1043 = vadd.f32 %v858, %v1042
        %v1044 = vld [vmem:[%s5] sm:$0xff]
        %1046 = vset.pattern.permute.xlu0 0
        %1047 = vperm.xlu0 %1046, %v1044
        %v1048 = vpop.permute.xlu0 %1047
        %v1050 = vadd.f32 %v1043, %v1048
        %vm1051 = vcmp.ge.f32.partialorder %v501, 0.0
        %v1052 = vmul.f32 %v501, 0.2
        %v1053 = vsel %vm1051, %v501, %v1052
        %vm1054 = vcmp.ge.f32.partialorder %v1050, 0.0
        %v1055 = vmul.f32 %v1050, 0.2
        %v1056 = vsel %vm1054, %v1050, %v1055
        %v1057 = vsub.f32 %v1053, %v1056
        %v1058 = vand.u32 2147483647, %v1057
        %v1059 = vmul.f32 %v1058, 0.5
        %v1060 = vtanh.pop %v1059
        %v1061 = vadd.f32 %v1060, 1.0
        %v1062 = vmul.f32 %v1061, 0.5
        %1063 = vst [vmem:[%s307] sm:$0xff] %v1062
        %s1064 = sand.u32 %s170, 1
        %s1065 = scalar_lea.sflag [#allocation4], %s1064
        %s1066 = sand.u32 %s170, 1
        %s1067 = smul.addr %s1066, 8
        %s1068 = scalar_lea.vmem [#allocation7], %s1067
        // Predicated region
        $region53: #{tpu_custom_call.1} parent=43 // pred_check
          %p1069 = pneg %p180
        $region54: #{tpu_custom_call.1} parent=43 // pred_check_branch
          %1071 = sbr.rel (%p1069) target = $region56
        $region55: #{tpu_custom_call.1} parent=43 // pred_region
          %s1073 = ssub.s32 128, 128
          %1074 = vsyncadd %s1065, %s1073
          %s1075 = smul.addr %s26, 128
          %s1076 = scalar_lea.hbm %s6, %s1075
          %s1078 = sshll.u32 %s1068, 4
          %s1079 = int_to_ptr.vmem [resolvable:$true] %s1078
          %1081 = dma.vmem_to_hbm [thread:$0]  %s1079, 128, %s1076, %s1065
        $region56: #{tpu_custom_call.1} parent=43 // pred_fallthru
          _
      $region44: #{tpu_custom_call.1} parent=5 // pred_fallthru
        _
      %p1082 = scmp.le.s32.totalorder 2, %s21
      // Predicated region
      $region57: #{tpu_custom_call.1} parent=5 // pred_check
        %p1083 = pneg %p1082
      $region58: #{tpu_custom_call.1} parent=5 // pred_check_branch
        %1085 = sbr.rel (%p1083) target = $region60
      $region59: #{tpu_custom_call.1} parent=5 // pred_region
        %s1086 = ssub.s32 %s21, 2
        // Predicated region
        $region61: #{tpu_custom_call.1} parent=59 // pred_check
          %p1087 = pneg %p186
        $region62: #{tpu_custom_call.1} parent=59 // pred_check_branch
          %1089 = sbr.rel (%p1087) target = $region64
        $region63: #{tpu_custom_call.1} parent=59 // pred_region
          %s1090 = sand.u32 %s171, 1
          %s1091 = scalar_lea.sflag [#allocation4], %s1090
          %s1092 = sand.u32 %s171, 1
          %s1093 = smul.addr %s1092, 8
          %s1094 = scalar_lea.vmem [#allocation7], %s1093
          %1095 = dma.done %s1091, 128
        $region64: #{tpu_custom_call.1} parent=59 // pred_fallthru
          _
      $region60: #{tpu_custom_call.1} parent=5 // pred_fallthru
        _
    $region6: #{tpu_custom_call.1} parent=1 // loop_footer
      %s25 = sadd.s32 1, %s21
    $region7: #{tpu_custom_call.1} parent=1 // loop_footer_branch
      %20 = sbr.rel target = $region3
    $region8: #{tpu_custom_call.1} parent=1 // loop_exit
      _
    %1096 = vsyncpa [#allocation3], 1
    %s1097 = scalar_lea.sflag [#allocation3], 1
    %1098 = vsyncpa %s1097, 1
    %1099 = vsyncpa [#allocation6], 1
    %s1100 = scalar_lea.sflag [#allocation6], 1
    %1101 = vsyncpa %s1100, 1
    %1102 = vsyncpa [#allocation4], 1
    %s1103 = scalar_lea.sflag [#allocation4], 1
    %1104 = vsyncpa %s1103, 1

</llo_original>
